<compile_context>
chip_gen: v7x
topology: tpu7x:2x2x1
jax: 0.10.0
libtpu: 0.0.40
codegen_flags: <defaults>
</compile_context>

<pallas_src>
import jax
import jax.numpy as jnp
from jax.experimental import pallas as pl
from jax.experimental.pallas import tpu as pltpu


# ---------------------------------------------------------------------------
# Pallas kernel
# ---------------------------------------------------------------------------
def make_predictor_kernel(layer_descs, B, T):
    """layer_descs: tuple of (c_in, c_out, k_sz, has_f0) per conv layer
    (encoder layers first, then ar_encoder layers). `has_f0` marks the first
    ar layer whose last input channel is f0."""

    def kernel(h_ref, f0_ref, *refs):
        pad = refs[-1]               # VMEM scratch (T + Kmax - 1, Cmax)
        out_ref = refs[-2]           # (B, T)
        params = refs[:-2]
        post_w_ref = params[-2]      # (1, C_last)
        post_b_ref = params[-1]      # (1, 1)
        conv_params = params[:-2]    # [w0, b0, w1, b1, ...] reshaped host-side

        for b in range(B):
            x = h_ref[b].astype(jnp.float32)          # (T, C0)

            for li, (c_in, c_out, k_sz, has_f0) in enumerate(layer_descs):
                w_ref = conv_params[2 * li]            # (k_sz * c_in, c_out)
                b_ref = conv_params[2 * li + 1]        # (1, c_out)
                half = k_sz // 2

                # Zero halo + write the layer input into the padded scratch
                # once (re-zeroed per layer so differing kernel sizes / batch
                # reuse can never read stale rows).
                pad[...] = jnp.zeros_like(pad)
                if has_f0:
                    # autoregressive input: x channels, then f0 as the last
                    # channel (same order as torch.cat((h, f0), dim=1)).
                    pad[half:half + T, :c_in - 1] = x
                    pad[half:half + T, c_in - 1:c_in] = (
                        f0_ref[b].astype(jnp.float32))
                else:
                    pad[half:half + T, :c_in] = x

                # im2col: stack K shifted static views -> one MXU matmul.
                cols = [pad[k:k + T, :c_in] for k in range(k_sz)]
                xcol = cols[0] if k_sz == 1 else jnp.concatenate(cols, axis=-1)
                x = jnp.dot(xcol, w_ref[...],
                            preferred_element_type=jnp.float32) + b_ref[...]
                x = jnp.maximum(x, 0.0)

            # post 1x1 conv with a single output channel: VPU multiply +
            # lane reduction (no N=1 MXU pass, no (T, 1) lane-sparse output).
            y = jnp.sum(x * post_w_ref[...], axis=-1, keepdims=True)
            y = y + post_b_ref[...]                    # (T, 1)
            out_ref[b, :] = y[:, 0]                    # lane-dense (T,) row

    return kernel


def predictor_forward_pallas(h, f0, enc_params, ar_params, post_w, post_b):
    """h: (B, T, C0) f32, f0: (B, T, 1) f32 -> (B, T) f32."""
    B, T, C0 = h.shape

    layer_descs = []
    flat_params = []
    for w, b in enc_params:                 # w: (K, Cin, Cout), b: (1, Cout)
        K, cin, cout = w.shape
        assert K % 2 == 1, "padding=K//2 'same' conv only matches odd K"
        layer_descs.append((cin, cout, K, False))
        flat_params += [w.reshape(K * cin, cout), b.reshape(1, cout)]
    for li, (w, b) in enumerate(ar_params):
        K, cin, cout = w.shape
        assert K % 2 == 1, "padding=K//2 'same' conv only matches odd K"
        layer_descs.append((cin, cout, K, li == 0))
        flat_params += [w.reshape(K * cin, cout), b.reshape(1, cout)]
    # post: (C_last, 1) -> row (1, C_last); bias -> (1, 1)
    flat_params += [post_w.reshape(1, -1), post_b.reshape(1, 1)]

    kmax = max(d[2] for d in layer_descs)
    cmax = max(d[0] for d in layer_descs)

    in_specs = [
        pl.BlockSpec((B, T, C0), lambda i: (0, 0, 0)),
        pl.BlockSpec((B, T, 1), lambda i: (0, 0, 0)),
    ]
    for p in flat_params:
        in_specs.append(pl.BlockSpec(p.shape, lambda i, n=p.ndim: (0,) * n))

    kernel = make_predictor_kernel(tuple(layer_descs), B, T)

    out = pl.pallas_call(
        kernel,
        out_shape=jax.ShapeDtypeStruct((B, T), jnp.float32),
        grid=(1,),
        in_specs=in_specs,
        out_specs=pl.BlockSpec((B, T), lambda i: (0, 0)),
        scratch_shapes=[pltpu.VMEM((T + kmax - 1, cmax), jnp.float32)],
        compiler_params=pltpu.CompilerParams(
            dimension_semantics=("arbitrary",)),
    )(h, f0, *flat_params)

    return out                                # (B, T)


# ---------------------------------------------------------------------------
# Pure-JAX reference (same math, for sanity check)
# ---------------------------------------------------------------------------
def _conv1d_ref(x, w, b):                     # x (B,T,Cin), w (K,Cin,Cout)
    K = w.shape[0]
    half = K // 2
    T = x.shape[1]
    xp = jnp.pad(x, ((0, 0), (half, half), (0, 0)))
    out = jnp.zeros(x.shape[:2] + (w.shape[-1],), jnp.float32)
    for k in range(K):
        out = out + jnp.einsum("btc,cd->btd", xp[:, k:k + T], w[k])
    return out + b.reshape(1, 1, -1)


def predictor_forward_ref(h, f0, enc_params, ar_params, post_w, post_b):
    x = h
    for w, b in enc_params:
        x = jax.nn.relu(_conv1d_ref(x, w, b))
    x = jnp.concatenate([x, f0], axis=-1)
    for w, b in ar_params:
        x = jax.nn.relu(_conv1d_ref(x, w, b))
    y = jnp.einsum("btc,cd->btd", x, post_w) + post_b.reshape(1, 1, -1)
    return y[..., 0]


# ---------------------------------------------------------------------------
# Deterministic parameter / input construction
# ---------------------------------------------------------------------------
if __name__ == "__main__":
    # module hyper-parameters (small)
    phoneme_size = 10
    phoneme_embedding_size = 8
    encoder_hidden_size = 32
    encoder_kernel_size = 3
    encoder_layer_num = 2
    ar_encoder_hidden_size = 32
    ar_encoder_kernel_size = 3
    ar_encoder_layer_num = 2
    speaker_size = 4
    speaker_embedding_size = 4

    B, T = 2, 16
    enc_in = phoneme_embedding_size + speaker_embedding_size + 4   # 16
    ar_in = encoder_hidden_size + 1                                # 33
    post_in = ar_encoder_hidden_size                               # 32

    key = jax.random.PRNGKey(0)
    ks = iter(jax.random.split(key, 64))

    # embeddings
    phoneme_emb = 0.1 * jax.random.normal(
        next(ks), (phoneme_size + 1, phoneme_embedding_size), jnp.float32)
    phoneme_emb = phoneme_emb.at[0].set(0.0)      # padding_idx = 0
    speaker_emb = 0.1 * jax.random.normal(
        next(ks), (speaker_size, speaker_embedding_size), jnp.float32)

    def make_conv_params(key_iter, n_layers, c_in, c_hid, ksize):
        params = []
        cin = c_in
        for _ in range(n_layers):
            w = 0.1 * jax.random.normal(next(key_iter), (ksize, cin, c_hid),
                                        jnp.float32)
            b = 0.01 * jax.random.normal(next(key_iter), (1, c_hid),
                                         jnp.float32)
            params.append((w, b))
            cin = c_hid
        return params

    enc_params = make_conv_params(ks, encoder_layer_num, enc_in,
                                  encoder_hidden_size, encoder_kernel_size)
    ar_params = make_conv_params(ks, ar_encoder_layer_num, ar_in,
                                 ar_encoder_hidden_size,
                                 ar_encoder_kernel_size)
    post_w = 0.1 * jax.random.normal(next(ks), (post_in, 1), jnp.float32)
    post_b = 0.01 * jax.random.normal(next(ks), (1, 1), jnp.float32)

    # inputs
    vowel = jax.random.randint(next(ks), (B, T), -1, phoneme_size, jnp.int32)
    consonant = jax.random.randint(next(ks), (B, T), -1, phoneme_size,
                                   jnp.int32)
    start_accent = jax.random.randint(next(ks), (B, T), 0, 2, jnp.int32)
    end_accent = jax.random.randint(next(ks), (B, T), 0, 2, jnp.int32)
    start_phrase = jax.random.randint(next(ks), (B, T), 0, 2, jnp.int32)
    end_phrase = jax.random.randint(next(ks), (B, T), 0, 2, jnp.int32)
    f0 = jax.random.normal(next(ks), (B, T), jnp.float32)
    speaker_id = jax.random.randint(next(ks), (B,), 0, speaker_size,
                                    jnp.int32)

    # glue (embedding lookups / stacking) in plain JAX, channels-last
    ph = (jnp.take(phoneme_emb, vowel + 1, axis=0)
          + jnp.take(phoneme_emb, consonant + 1, axis=0))          # (B,T,E)
    ah = jnp.stack([start_accent, end_accent, start_phrase, end_phrase],
                   axis=-1).astype(jnp.float32)                    # (B,T,4)
    spk = jnp.take(speaker_emb, speaker_id, axis=0)                # (B,S)
    spk = jnp.broadcast_to(spk[:, None, :],
                           (B, T, speaker_embedding_size))         # (B,T,S)
    h = jnp.concatenate([ph, ah, spk], axis=-1)                    # (B,T,16)
    f0_in = f0[..., None]                                          # (B,T,1)

    # run Pallas kernel
    out = predictor_forward_pallas(h, f0_in, enc_params, ar_params,
                                   post_w, post_b)
    out = jax.block_until_ready(out)

    # sanity check against pure-JAX reference
    ref = predictor_forward_ref(h, f0_in, enc_params, ar_params,
                                post_w, post_b)
    ref = jax.block_until_ready(ref)
    assert out.shape == (B, T)
    assert jnp.allclose(out, ref, rtol=1e-3, atol=1e-3), (
        f"max abs diff {jnp.max(jnp.abs(out - ref))}")

    print("KERNEL_OK")
</pallas_src>

<mosaic_0001>
module attributes {stable_mosaic.version = 11 : i64} {
  func.func @kernel(%arg0: i32, %arg1: memref<2x16x16xf32, #tpu.memory_space<vmem>>, %arg2: memref<2x16x1xf32, #tpu.memory_space<vmem>>, %arg3: memref<48x32xf32, #tpu.memory_space<vmem>>, %arg4: memref<1x32xf32, #tpu.memory_space<vmem>>, %arg5: memref<96x32xf32, #tpu.memory_space<vmem>>, %arg6: memref<1x32xf32, #tpu.memory_space<vmem>>, %arg7: memref<99x32xf32, #tpu.memory_space<vmem>>, %arg8: memref<1x32xf32, #tpu.memory_space<vmem>>, %arg9: memref<96x32xf32, #tpu.memory_space<vmem>>, %arg10: memref<1x32xf32, #tpu.memory_space<vmem>>, %arg11: memref<1x32xf32, #tpu.memory_space<vmem>>, %arg12: memref<1x1xf32, #tpu.memory_space<vmem>>, %arg13: memref<2x16xf32, #tpu.memory_space<vmem>>, %arg14: memref<18x33xf32, #tpu.memory_space<vmem>>) attributes {dimension_semantics = [#tpu.dimension_semantics<arbitrary>], iteration_bounds = array<i64: 1>, scalar_prefetch = 0 : i64, scratch_operands = 1 : i64, tpu.core_type = #tpu.core_type<tc>, window_params = [{pipeline_mode = #tpu.pipeline_mode<synchronous>, transform_indices = @transform_0, window_bounds = array<i64: 2, 16, 16>}, {pipeline_mode = #tpu.pipeline_mode<synchronous>, transform_indices = @transform_1, window_bounds = array<i64: 2, 16, 1>}, {pipeline_mode = #tpu.pipeline_mode<synchronous>, transform_indices = @transform_2, window_bounds = array<i64: 48, 32>}, {pipeline_mode = #tpu.pipeline_mode<synchronous>, transform_indices = @transform_3, window_bounds = array<i64: 1, 32>}, {pipeline_mode = #tpu.pipeline_mode<synchronous>, transform_indices = @transform_4, window_bounds = array<i64: 96, 32>}, {pipeline_mode = #tpu.pipeline_mode<synchronous>, transform_indices = @transform_5, window_bounds = array<i64: 1, 32>}, {pipeline_mode = #tpu.pipeline_mode<synchronous>, transform_indices = @transform_6, window_bounds = array<i64: 99, 32>}, {pipeline_mode = #tpu.pipeline_mode<synchronous>, transform_indices = @transform_7, window_bounds = array<i64: 1, 32>}, {pipeline_mode = #tpu.pipeline_mode<synchronous>, transform_indices = @transform_8, window_bounds = array<i64: 96, 32>}, {pipeline_mode = #tpu.pipeline_mode<synchronous>, transform_indices = @transform_9, window_bounds = array<i64: 1, 32>}, {pipeline_mode = #tpu.pipeline_mode<synchronous>, transform_indices = @transform_10, window_bounds = array<i64: 1, 32>}, {pipeline_mode = #tpu.pipeline_mode<synchronous>, transform_indices = @transform_11, window_bounds = array<i64: 1, 1>}, {pipeline_mode = #tpu.pipeline_mode<synchronous>, transform_indices = @transform_12, window_bounds = array<i64: 2, 16>}]} {
    %c0 = arith.constant 0 : index
    %c0_0 = arith.constant 0 : index
    %c0_1 = arith.constant 0 : index
    %0 = vector.load %arg1[%c0, %c0_0, %c0_1] : memref<2x16x16xf32, #tpu.memory_space<vmem>>, vector<1x16x16xf32>
    %1 = vector.shape_cast %0 : vector<1x16x16xf32> to vector<16x16xf32>
    %cst = arith.constant 0.000000e+00 : f32
    %2 = vector.broadcast %cst : f32 to vector<18x33xf32>
    %c0_2 = arith.constant 0 : index
    %c0_3 = arith.constant 0 : index
    %3 = vector.load %arg14[%c0_2, %c0_3] : memref<18x33xf32, #tpu.memory_space<vmem>>, vector<18x33xf32>
    tpu.vector_store %arg14[%c0_2, %c0_3], %2 {strides = array<i32>} : memref<18x33xf32, #tpu.memory_space<vmem>>, vector<18x33xf32>,
    %c1 = arith.constant 1 : index
    %c0_4 = arith.constant 0 : index
    %4 = vector.load %arg14[%c1, %c0_4] : memref<18x33xf32, #tpu.memory_space<vmem>>, vector<16x16xf32>
    tpu.vector_store %arg14[%c1, %c0_4], %1 {strides = array<i32>} : memref<18x33xf32, #tpu.memory_space<vmem>>, vector<16x16xf32>,
    %c0_5 = arith.constant 0 : index
    %c0_6 = arith.constant 0 : index
    %5 = vector.load %arg14[%c0_5, %c0_6] : memref<18x33xf32, #tpu.memory_space<vmem>>, vector<16x16xf32>
    %c1_7 = arith.constant 1 : index
    %c0_8 = arith.constant 0 : index
    %6 = vector.load %arg14[%c1_7, %c0_8] : memref<18x33xf32, #tpu.memory_space<vmem>>, vector<16x16xf32>
    %c2 = arith.constant 2 : index
    %c0_9 = arith.constant 0 : index
    %7 = vector.load %arg14[%c2, %c0_9] : memref<18x33xf32, #tpu.memory_space<vmem>>, vector<16x16xf32>
    %8 = tpu.concatenate %5, %6, %7 in 1 : vector<16x16xf32>, vector<16x16xf32>, vector<16x16xf32> -> vector<16x48xf32>
    %c0_10 = arith.constant 0 : index
    %c0_11 = arith.constant 0 : index
    %9 = vector.load %arg3[%c0_10, %c0_11] : memref<48x32xf32, #tpu.memory_space<vmem>>, vector<48x32xf32>
    %cst_12 = arith.constant dense<0.000000e+00> : vector<16x32xf32>
    %10 = tpu.matmul %8, %9, %cst_12 {dimension_numbers = #tpu.dot_dimension_numbers<[1], [0], [0], [1], [0, 0, 1, 1], [], []>} : vector<16x48xf32>, vector<48x32xf32>, vector<16x32xf32> -> vector<16x32xf32>
    %c0_13 = arith.constant 0 : index
    %c0_14 = arith.constant 0 : index
    %11 = vector.load %arg4[%c0_13, %c0_14] : memref<1x32xf32, #tpu.memory_space<vmem>>, vector<1x32xf32>
    %12 = vector.broadcast %11 : vector<1x32xf32> to vector<16x32xf32>
    %13 = arith.addf %10, %12 : vector<16x32xf32>
    %cst_15 = arith.constant 0.000000e+00 : f32
    %14 = vector.broadcast %cst_15 : f32 to vector<16x32xf32>
    %15 = arith.maximumf %13, %14 : vector<16x32xf32>
    %cst_16 = arith.constant 0.000000e+00 : f32
    %16 = vector.broadcast %cst_16 : f32 to vector<18x33xf32>
    %c0_17 = arith.constant 0 : index
    %c0_18 = arith.constant 0 : index
    %17 = vector.load %arg14[%c0_17, %c0_18] : memref<18x33xf32, #tpu.memory_space<vmem>>, vector<18x33xf32>
    tpu.vector_store %arg14[%c0_17, %c0_18], %16 {strides = array<i32>} : memref<18x33xf32, #tpu.memory_space<vmem>>, vector<18x33xf32>,
    %c1_19 = arith.constant 1 : index
    %c0_20 = arith.constant 0 : index
    %18 = vector.load %arg14[%c1_19, %c0_20] : memref<18x33xf32, #tpu.memory_space<vmem>>, vector<16x32xf32>
    tpu.vector_store %arg14[%c1_19, %c0_20], %15 {strides = array<i32>} : memref<18x33xf32, #tpu.memory_space<vmem>>, vector<16x32xf32>,
    %c0_21 = arith.constant 0 : index
    %c0_22 = arith.constant 0 : index
    %19 = vector.load %arg14[%c0_21, %c0_22] : memref<18x33xf32, #tpu.memory_space<vmem>>, vector<16x32xf32>
    %c1_23 = arith.constant 1 : index
    %c0_24 = arith.constant 0 : index
    %20 = vector.load %arg14[%c1_23, %c0_24] : memref<18x33xf32, #tpu.memory_space<vmem>>, vector<16x32xf32>
    %c2_25 = arith.constant 2 : index
    %c0_26 = arith.constant 0 : index
    %21 = vector.load %arg14[%c2_25, %c0_26] : memref<18x33xf32, #tpu.memory_space<vmem>>, vector<16x32xf32>
    %22 = tpu.concatenate %19, %20, %21 in 1 : vector<16x32xf32>, vector<16x32xf32>, vector<16x32xf32> -> vector<16x96xf32>
    %c0_27 = arith.constant 0 : index
    %c0_28 = arith.constant 0 : index
    %23 = vector.load %arg5[%c0_27, %c0_28] : memref<96x32xf32, #tpu.memory_space<vmem>>, vector<96x32xf32>
    %cst_29 = arith.constant dense<0.000000e+00> : vector<16x32xf32>
    %24 = tpu.matmul %22, %23, %cst_29 {dimension_numbers = #tpu.dot_dimension_numbers<[1], [0], [0], [1], [0, 0, 1, 1], [], []>} : vector<16x96xf32>, vector<96x32xf32>, vector<16x32xf32> -> vector<16x32xf32>
    %c0_30 = arith.constant 0 : index
    %c0_31 = arith.constant 0 : index
    %25 = vector.load %arg6[%c0_30, %c0_31] : memref<1x32xf32, #tpu.memory_space<vmem>>, vector<1x32xf32>
    %26 = vector.broadcast %25 : vector<1x32xf32> to vector<16x32xf32>
    %27 = arith.addf %24, %26 : vector<16x32xf32>
    %cst_32 = arith.constant 0.000000e+00 : f32
    %28 = vector.broadcast %cst_32 : f32 to vector<16x32xf32>
    %29 = arith.maximumf %27, %28 : vector<16x32xf32>
    %cst_33 = arith.constant 0.000000e+00 : f32
    %30 = vector.broadcast %cst_33 : f32 to vector<18x33xf32>
    %c0_34 = arith.constant 0 : index
    %c0_35 = arith.constant 0 : index
    %31 = vector.load %arg14[%c0_34, %c0_35] : memref<18x33xf32, #tpu.memory_space<vmem>>, vector<18x33xf32>
    tpu.vector_store %arg14[%c0_34, %c0_35], %30 {strides = array<i32>} : memref<18x33xf32, #tpu.memory_space<vmem>>, vector<18x33xf32>,
    %c1_36 = arith.constant 1 : index
    %c0_37 = arith.constant 0 : index
    %32 = vector.load %arg14[%c1_36, %c0_37] : memref<18x33xf32, #tpu.memory_space<vmem>>, vector<16x32xf32>
    tpu.vector_store %arg14[%c1_36, %c0_37], %29 {strides = array<i32>} : memref<18x33xf32, #tpu.memory_space<vmem>>, vector<16x32xf32>,
    %c0_38 = arith.constant 0 : index
    %c0_39 = arith.constant 0 : index
    %c0_40 = arith.constant 0 : index
    %33 = vector.load %arg2[%c0_38, %c0_39, %c0_40] : memref<2x16x1xf32, #tpu.memory_space<vmem>>, vector<1x16x1xf32>
    %34 = vector.shape_cast %33 : vector<1x16x1xf32> to vector<16x1xf32>
    %c1_41 = arith.constant 1 : index
    %c32 = arith.constant 32 : index
    %35 = vector.load %arg14[%c1_41, %c32] : memref<18x33xf32, #tpu.memory_space<vmem>>, vector<16x1xf32>
    tpu.vector_store %arg14[%c1_41, %c32], %34 {strides = array<i32>} : memref<18x33xf32, #tpu.memory_space<vmem>>, vector<16x1xf32>,
    %c0_42 = arith.constant 0 : index
    %c0_43 = arith.constant 0 : index
    %36 = vector.load %arg14[%c0_42, %c0_43] : memref<18x33xf32, #tpu.memory_space<vmem>>, vector<16x33xf32>
    %c1_44 = arith.constant 1 : index
    %c0_45 = arith.constant 0 : index
    %37 = vector.load %arg14[%c1_44, %c0_45] : memref<18x33xf32, #tpu.memory_space<vmem>>, vector<16x33xf32>
    %c2_46 = arith.constant 2 : index
    %c0_47 = arith.constant 0 : index
    %38 = vector.load %arg14[%c2_46, %c0_47] : memref<18x33xf32, #tpu.memory_space<vmem>>, vector<16x33xf32>
    %39 = tpu.concatenate %36, %37, %38 in 1 : vector<16x33xf32>, vector<16x33xf32>, vector<16x33xf32> -> vector<16x99xf32>
    %c0_48 = arith.constant 0 : index
    %c0_49 = arith.constant 0 : index
    %40 = vector.load %arg7[%c0_48, %c0_49] : memref<99x32xf32, #tpu.memory_space<vmem>>, vector<99x32xf32>
    %cst_50 = arith.constant dense<0.000000e+00> : vector<16x32xf32>
    %41 = tpu.matmul %39, %40, %cst_50 {dimension_numbers = #tpu.dot_dimension_numbers<[1], [0], [0], [1], [0, 0, 1, 1], [], []>} : vector<16x99xf32>, vector<99x32xf32>, vector<16x32xf32> -> vector<16x32xf32>
    %c0_51 = arith.constant 0 : index
    %c0_52 = arith.constant 0 : index
    %42 = vector.load %arg8[%c0_51, %c0_52] : memref<1x32xf32, #tpu.memory_space<vmem>>, vector<1x32xf32>
    %43 = vector.broadcast %42 : vector<1x32xf32> to vector<16x32xf32>
    %44 = arith.addf %41, %43 : vector<16x32xf32>
    %cst_53 = arith.constant 0.000000e+00 : f32
    %45 = vector.broadcast %cst_53 : f32 to vector<16x32xf32>
    %46 = arith.maximumf %44, %45 : vector<16x32xf32>
    %cst_54 = arith.constant 0.000000e+00 : f32
    %47 = vector.broadcast %cst_54 : f32 to vector<18x33xf32>
    %c0_55 = arith.constant 0 : index
    %c0_56 = arith.constant 0 : index
    %48 = vector.load %arg14[%c0_55, %c0_56] : memref<18x33xf32, #tpu.memory_space<vmem>>, vector<18x33xf32>
    tpu.vector_store %arg14[%c0_55, %c0_56], %47 {strides = array<i32>} : memref<18x33xf32, #tpu.memory_space<vmem>>, vector<18x33xf32>,
    %c1_57 = arith.constant 1 : index
    %c0_58 = arith.constant 0 : index
    %49 = vector.load %arg14[%c1_57, %c0_58] : memref<18x33xf32, #tpu.memory_space<vmem>>, vector<16x32xf32>
    tpu.vector_store %arg14[%c1_57, %c0_58], %46 {strides = array<i32>} : memref<18x33xf32, #tpu.memory_space<vmem>>, vector<16x32xf32>,
    %c0_59 = arith.constant 0 : index
    %c0_60 = arith.constant 0 : index
    %50 = vector.load %arg14[%c0_59, %c0_60] : memref<18x33xf32, #tpu.memory_space<vmem>>, vector<16x32xf32>
    %c1_61 = arith.constant 1 : index
    %c0_62 = arith.constant 0 : index
    %51 = vector.load %arg14[%c1_61, %c0_62] : memref<18x33xf32, #tpu.memory_space<vmem>>, vector<16x32xf32>
    %c2_63 = arith.constant 2 : index
    %c0_64 = arith.constant 0 : index
    %52 = vector.load %arg14[%c2_63, %c0_64] : memref<18x33xf32, #tpu.memory_space<vmem>>, vector<16x32xf32>
    %53 = tpu.concatenate %50, %51, %52 in 1 : vector<16x32xf32>, vector<16x32xf32>, vector<16x32xf32> -> vector<16x96xf32>
    %c0_65 = arith.constant 0 : index
    %c0_66 = arith.constant 0 : index
    %54 = vector.load %arg9[%c0_65, %c0_66] : memref<96x32xf32, #tpu.memory_space<vmem>>, vector<96x32xf32>
    %cst_67 = arith.constant dense<0.000000e+00> : vector<16x32xf32>
    %55 = tpu.matmul %53, %54, %cst_67 {dimension_numbers = #tpu.dot_dimension_numbers<[1], [0], [0], [1], [0, 0, 1, 1], [], []>} : vector<16x96xf32>, vector<96x32xf32>, vector<16x32xf32> -> vector<16x32xf32>
    %c0_68 = arith.constant 0 : index
    %c0_69 = arith.constant 0 : index
    %56 = vector.load %arg10[%c0_68, %c0_69] : memref<1x32xf32, #tpu.memory_space<vmem>>, vector<1x32xf32>
    %57 = vector.broadcast %56 : vector<1x32xf32> to vector<16x32xf32>
    %58 = arith.addf %55, %57 : vector<16x32xf32>
    %cst_70 = arith.constant 0.000000e+00 : f32
    %59 = vector.broadcast %cst_70 : f32 to vector<16x32xf32>
    %60 = arith.maximumf %58, %59 : vector<16x32xf32>
    %c0_71 = arith.constant 0 : index
    %c0_72 = arith.constant 0 : index
    %61 = vector.load %arg11[%c0_71, %c0_72] : memref<1x32xf32, #tpu.memory_space<vmem>>, vector<1x32xf32>
    %62 = vector.broadcast %61 : vector<1x32xf32> to vector<16x32xf32>
    %63 = arith.mulf %60, %62 : vector<16x32xf32>
    %cst_73 = arith.constant dense<0.000000e+00> : vector<16xf32>
    %64 = vector.multi_reduction <add>, %63, %cst_73 [1] : vector<16x32xf32> to vector<16xf32>
    %65 = vector.shape_cast %64 : vector<16xf32> to vector<16x1xf32>
    %c0_74 = arith.constant 0 : index
    %c0_75 = arith.constant 0 : index
    %66 = vector.load %arg12[%c0_74, %c0_75] : memref<1x1xf32, #tpu.memory_space<vmem>>, vector<1x1xf32>
    %67 = vector.broadcast %66 : vector<1x1xf32> to vector<16x1xf32>
    %68 = arith.addf %65, %67 : vector<16x1xf32>
    %69 = vector.shape_cast %68 : vector<16x1xf32> to vector<16xf32>
    %c0_76 = arith.constant 0 : index
    %c0_77 = arith.constant 0 : index
    %70 = vector.load %arg13[%c0_76, %c0_77] : memref<2x16xf32, #tpu.memory_space<vmem>>, vector<1x16xf32>
    %71 = vector.shape_cast %70 : vector<1x16xf32> to vector<16xf32>
    %72 = vector.shape_cast %69 : vector<16xf32> to vector<1x16xf32>
    tpu.vector_store %arg13[%c0_76, %c0_77], %72 {strides = array<i32>} : memref<2x16xf32, #tpu.memory_space<vmem>>, vector<1x16xf32>,
    %c1_78 = arith.constant 1 : index
    %c0_79 = arith.constant 0 : index
    %c0_80 = arith.constant 0 : index
    %73 = vector.load %arg1[%c1_78, %c0_79, %c0_80] : memref<2x16x16xf32, #tpu.memory_space<vmem>>, vector<1x16x16xf32>
    %74 = vector.shape_cast %73 : vector<1x16x16xf32> to vector<16x16xf32>
    %cst_81 = arith.constant 0.000000e+00 : f32
    %75 = vector.broadcast %cst_81 : f32 to vector<18x33xf32>
    %c0_82 = arith.constant 0 : index
    %c0_83 = arith.constant 0 : index
    %76 = vector.load %arg14[%c0_82, %c0_83] : memref<18x33xf32, #tpu.memory_space<vmem>>, vector<18x33xf32>
    tpu.vector_store %arg14[%c0_82, %c0_83], %75 {strides = array<i32>} : memref<18x33xf32, #tpu.memory_space<vmem>>, vector<18x33xf32>,
    %c1_84 = arith.constant 1 : index
    %c0_85 = arith.constant 0 : index
    %77 = vector.load %arg14[%c1_84, %c0_85] : memref<18x33xf32, #tpu.memory_space<vmem>>, vector<16x16xf32>
    tpu.vector_store %arg14[%c1_84, %c0_85], %74 {strides = array<i32>} : memref<18x33xf32, #tpu.memory_space<vmem>>, vector<16x16xf32>,
    %c0_86 = arith.constant 0 : index
    %c0_87 = arith.constant 0 : index
    %78 = vector.load %arg14[%c0_86, %c0_87] : memref<18x33xf32, #tpu.memory_space<vmem>>, vector<16x16xf32>
    %c1_88 = arith.constant 1 : index
    %c0_89 = arith.constant 0 : index
    %79 = vector.load %arg14[%c1_88, %c0_89] : memref<18x33xf32, #tpu.memory_space<vmem>>, vector<16x16xf32>
    %c2_90 = arith.constant 2 : index
    %c0_91 = arith.constant 0 : index
    %80 = vector.load %arg14[%c2_90, %c0_91] : memref<18x33xf32, #tpu.memory_space<vmem>>, vector<16x16xf32>
    %81 = tpu.concatenate %78, %79, %80 in 1 : vector<16x16xf32>, vector<16x16xf32>, vector<16x16xf32> -> vector<16x48xf32>
    %c0_92 = arith.constant 0 : index
    %c0_93 = arith.constant 0 : index
    %82 = vector.load %arg3[%c0_92, %c0_93] : memref<48x32xf32, #tpu.memory_space<vmem>>, vector<48x32xf32>
    %cst_94 = arith.constant dense<0.000000e+00> : vector<16x32xf32>
    %83 = tpu.matmul %81, %82, %cst_94 {dimension_numbers = #tpu.dot_dimension_numbers<[1], [0], [0], [1], [0, 0, 1, 1], [], []>} : vector<16x48xf32>, vector<48x32xf32>, vector<16x32xf32> -> vector<16x32xf32>
    %c0_95 = arith.constant 0 : index
    %c0_96 = arith.constant 0 : index
    %84 = vector.load %arg4[%c0_95, %c0_96] : memref<1x32xf32, #tpu.memory_space<vmem>>, vector<1x32xf32>
    %85 = vector.broadcast %84 : vector<1x32xf32> to vector<16x32xf32>
    %86 = arith.addf %83, %85 : vector<16x32xf32>
    %cst_97 = arith.constant 0.000000e+00 : f32
    %87 = vector.broadcast %cst_97 : f32 to vector<16x32xf32>
    %88 = arith.maximumf %86, %87 : vector<16x32xf32>
    %cst_98 = arith.constant 0.000000e+00 : f32
    %89 = vector.broadcast %cst_98 : f32 to vector<18x33xf32>
    %c0_99 = arith.constant 0 : index
    %c0_100 = arith.constant 0 : index
    %90 = vector.load %arg14[%c0_99, %c0_100] : memref<18x33xf32, #tpu.memory_space<vmem>>, vector<18x33xf32>
    tpu.vector_store %arg14[%c0_99, %c0_100], %89 {strides = array<i32>} : memref<18x33xf32, #tpu.memory_space<vmem>>, vector<18x33xf32>,
    %c1_101 = arith.constant 1 : index
    %c0_102 = arith.constant 0 : index
    %91 = vector.load %arg14[%c1_101, %c0_102] : memref<18x33xf32, #tpu.memory_space<vmem>>, vector<16x32xf32>
    tpu.vector_store %arg14[%c1_101, %c0_102], %88 {strides = array<i32>} : memref<18x33xf32, #tpu.memory_space<vmem>>, vector<16x32xf32>,
    %c0_103 = arith.constant 0 : index
    %c0_104 = arith.constant 0 : index
    %92 = vector.load %arg14[%c0_103, %c0_104] : memref<18x33xf32, #tpu.memory_space<vmem>>, vector<16x32xf32>
    %c1_105 = arith.constant 1 : index
    %c0_106 = arith.constant 0 : index
    %93 = vector.load %arg14[%c1_105, %c0_106] : memref<18x33xf32, #tpu.memory_space<vmem>>, vector<16x32xf32>
    %c2_107 = arith.constant 2 : index
    %c0_108 = arith.constant 0 : index
    %94 = vector.load %arg14[%c2_107, %c0_108] : memref<18x33xf32, #tpu.memory_space<vmem>>, vector<16x32xf32>
    %95 = tpu.concatenate %92, %93, %94 in 1 : vector<16x32xf32>, vector<16x32xf32>, vector<16x32xf32> -> vector<16x96xf32>
    %c0_109 = arith.constant 0 : index
    %c0_110 = arith.constant 0 : index
    %96 = vector.load %arg5[%c0_109, %c0_110] : memref<96x32xf32, #tpu.memory_space<vmem>>, vector<96x32xf32>
    %cst_111 = arith.constant dense<0.000000e+00> : vector<16x32xf32>
    %97 = tpu.matmul %95, %96, %cst_111 {dimension_numbers = #tpu.dot_dimension_numbers<[1], [0], [0], [1], [0, 0, 1, 1], [], []>} : vector<16x96xf32>, vector<96x32xf32>, vector<16x32xf32> -> vector<16x32xf32>
    %c0_112 = arith.constant 0 : index
    %c0_113 = arith.constant 0 : index
    %98 = vector.load %arg6[%c0_112, %c0_113] : memref<1x32xf32, #tpu.memory_space<vmem>>, vector<1x32xf32>
    %99 = vector.broadcast %98 : vector<1x32xf32> to vector<16x32xf32>
    %100 = arith.addf %97, %99 : vector<16x32xf32>
    %cst_114 = arith.constant 0.000000e+00 : f32
    %101 = vector.broadcast %cst_114 : f32 to vector<16x32xf32>
    %102 = arith.maximumf %100, %101 : vector<16x32xf32>
    %cst_115 = arith.constant 0.000000e+00 : f32
    %103 = vector.broadcast %cst_115 : f32 to vector<18x33xf32>
    %c0_116 = arith.constant 0 : index
    %c0_117 = arith.constant 0 : index
    %104 = vector.load %arg14[%c0_116, %c0_117] : memref<18x33xf32, #tpu.memory_space<vmem>>, vector<18x33xf32>
    tpu.vector_store %arg14[%c0_116, %c0_117], %103 {strides = array<i32>} : memref<18x33xf32, #tpu.memory_space<vmem>>, vector<18x33xf32>,
    %c1_118 = arith.constant 1 : index
    %c0_119 = arith.constant 0 : index
    %105 = vector.load %arg14[%c1_118, %c0_119] : memref<18x33xf32, #tpu.memory_space<vmem>>, vector<16x32xf32>
    tpu.vector_store %arg14[%c1_118, %c0_119], %102 {strides = array<i32>} : memref<18x33xf32, #tpu.memory_space<vmem>>, vector<16x32xf32>,
    %c1_120 = arith.constant 1 : index
    %c0_121 = arith.constant 0 : index
    %c0_122 = arith.constant 0 : index
    %106 = vector.load %arg2[%c1_120, %c0_121, %c0_122] : memref<2x16x1xf32, #tpu.memory_space<vmem>>, vector<1x16x1xf32>
    %107 = vector.shape_cast %106 : vector<1x16x1xf32> to vector<16x1xf32>
    %c1_123 = arith.constant 1 : index
    %c32_124 = arith.constant 32 : index
    %108 = vector.load %arg14[%c1_123, %c32_124] : memref<18x33xf32, #tpu.memory_space<vmem>>, vector<16x1xf32>
    tpu.vector_store %arg14[%c1_123, %c32_124], %107 {strides = array<i32>} : memref<18x33xf32, #tpu.memory_space<vmem>>, vector<16x1xf32>,
    %c0_125 = arith.constant 0 : index
    %c0_126 = arith.constant 0 : index
    %109 = vector.load %arg14[%c0_125, %c0_126] : memref<18x33xf32, #tpu.memory_space<vmem>>, vector<16x33xf32>
    %c1_127 = arith.constant 1 : index
    %c0_128 = arith.constant 0 : index
    %110 = vector.load %arg14[%c1_127, %c0_128] : memref<18x33xf32, #tpu.memory_space<vmem>>, vector<16x33xf32>
    %c2_129 = arith.constant 2 : index
    %c0_130 = arith.constant 0 : index
    %111 = vector.load %arg14[%c2_129, %c0_130] : memref<18x33xf32, #tpu.memory_space<vmem>>, vector<16x33xf32>
    %112 = tpu.concatenate %109, %110, %111 in 1 : vector<16x33xf32>, vector<16x33xf32>, vector<16x33xf32> -> vector<16x99xf32>
    %c0_131 = arith.constant 0 : index
    %c0_132 = arith.constant 0 : index
    %113 = vector.load %arg7[%c0_131, %c0_132] : memref<99x32xf32, #tpu.memory_space<vmem>>, vector<99x32xf32>
    %cst_133 = arith.constant dense<0.000000e+00> : vector<16x32xf32>
    %114 = tpu.matmul %112, %113, %cst_133 {dimension_numbers = #tpu.dot_dimension_numbers<[1], [0], [0], [1], [0, 0, 1, 1], [], []>} : vector<16x99xf32>, vector<99x32xf32>, vector<16x32xf32> -> vector<16x32xf32>
    %c0_134 = arith.constant 0 : index
    %c0_135 = arith.constant 0 : index
    %115 = vector.load %arg8[%c0_134, %c0_135] : memref<1x32xf32, #tpu.memory_space<vmem>>, vector<1x32xf32>
    %116 = vector.broadcast %115 : vector<1x32xf32> to vector<16x32xf32>
    %117 = arith.addf %114, %116 : vector<16x32xf32>
    %cst_136 = arith.constant 0.000000e+00 : f32
    %118 = vector.broadcast %cst_136 : f32 to vector<16x32xf32>
    %119 = arith.maximumf %117, %118 : vector<16x32xf32>
    %cst_137 = arith.constant 0.000000e+00 : f32
    %120 = vector.broadcast %cst_137 : f32 to vector<18x33xf32>
    %c0_138 = arith.constant 0 : index
    %c0_139 = arith.constant 0 : index
    %121 = vector.load %arg14[%c0_138, %c0_139] : memref<18x33xf32, #tpu.memory_space<vmem>>, vector<18x33xf32>
    tpu.vector_store %arg14[%c0_138, %c0_139], %120 {strides = array<i32>} : memref<18x33xf32, #tpu.memory_space<vmem>>, vector<18x33xf32>,
    %c1_140 = arith.constant 1 : index
    %c0_141 = arith.constant 0 : index
    %122 = vector.load %arg14[%c1_140, %c0_141] : memref<18x33xf32, #tpu.memory_space<vmem>>, vector<16x32xf32>
    tpu.vector_store %arg14[%c1_140, %c0_141], %119 {strides = array<i32>} : memref<18x33xf32, #tpu.memory_space<vmem>>, vector<16x32xf32>,
    %c0_142 = arith.constant 0 : index
    %c0_143 = arith.constant 0 : index
    %123 = vector.load %arg14[%c0_142, %c0_143] : memref<18x33xf32, #tpu.memory_space<vmem>>, vector<16x32xf32>
    %c1_144 = arith.constant 1 : index
    %c0_145 = arith.constant 0 : index
    %124 = vector.load %arg14[%c1_144, %c0_145] : memref<18x33xf32, #tpu.memory_space<vmem>>, vector<16x32xf32>
    %c2_146 = arith.constant 2 : index
    %c0_147 = arith.constant 0 : index
    %125 = vector.load %arg14[%c2_146, %c0_147] : memref<18x33xf32, #tpu.memory_space<vmem>>, vector<16x32xf32>
    %126 = tpu.concatenate %123, %124, %125 in 1 : vector<16x32xf32>, vector<16x32xf32>, vector<16x32xf32> -> vector<16x96xf32>
    %c0_148 = arith.constant 0 : index
    %c0_149 = arith.constant 0 : index
    %127 = vector.load %arg9[%c0_148, %c0_149] : memref<96x32xf32, #tpu.memory_space<vmem>>, vector<96x32xf32>
    %cst_150 = arith.constant dense<0.000000e+00> : vector<16x32xf32>
    %128 = tpu.matmul %126, %127, %cst_150 {dimension_numbers = #tpu.dot_dimension_numbers<[1], [0], [0], [1], [0, 0, 1, 1], [], []>} : vector<16x96xf32>, vector<96x32xf32>, vector<16x32xf32> -> vector<16x32xf32>
    %c0_151 = arith.constant 0 : index
    %c0_152 = arith.constant 0 : index
    %129 = vector.load %arg10[%c0_151, %c0_152] : memref<1x32xf32, #tpu.memory_space<vmem>>, vector<1x32xf32>
    %130 = vector.broadcast %129 : vector<1x32xf32> to vector<16x32xf32>
    %131 = arith.addf %128, %130 : vector<16x32xf32>
    %cst_153 = arith.constant 0.000000e+00 : f32
    %132 = vector.broadcast %cst_153 : f32 to vector<16x32xf32>
    %133 = arith.maximumf %131, %132 : vector<16x32xf32>
    %c0_154 = arith.constant 0 : index
    %c0_155 = arith.constant 0 : index
    %134 = vector.load %arg11[%c0_154, %c0_155] : memref<1x32xf32, #tpu.memory_space<vmem>>, vector<1x32xf32>
    %135 = vector.broadcast %134 : vector<1x32xf32> to vector<16x32xf32>
    %136 = arith.mulf %133, %135 : vector<16x32xf32>
    %cst_156 = arith.constant dense<0.000000e+00> : vector<16xf32>
    %137 = vector.multi_reduction <add>, %136, %cst_156 [1] : vector<16x32xf32> to vector<16xf32>
    %138 = vector.shape_cast %137 : vector<16xf32> to vector<16x1xf32>
    %c0_157 = arith.constant 0 : index
    %c0_158 = arith.constant 0 : index
    %139 = vector.load %arg12[%c0_157, %c0_158] : memref<1x1xf32, #tpu.memory_space<vmem>>, vector<1x1xf32>
    %140 = vector.broadcast %139 : vector<1x1xf32> to vector<16x1xf32>
    %141 = arith.addf %138, %140 : vector<16x1xf32>
    %142 = vector.shape_cast %141 : vector<16x1xf32> to vector<16xf32>
    %c1_159 = arith.constant 1 : index
    %c0_160 = arith.constant 0 : index
    %143 = vector.load %arg13[%c1_159, %c0_160] : memref<2x16xf32, #tpu.memory_space<vmem>>, vector<1x16xf32>
    %144 = vector.shape_cast %143 : vector<1x16xf32> to vector<16xf32>
    %145 = vector.shape_cast %142 : vector<16xf32> to vector<1x16xf32>
    tpu.vector_store %arg13[%c1_159, %c0_160], %145 {strides = array<i32>} : memref<2x16xf32, #tpu.memory_space<vmem>>, vector<1x16xf32>,
    return
  }
  func.func @transform_0(%arg0: i32) -> (i32, i32, i32) {
    %c0_i32 = arith.constant 0 : i32
    %c0_i32_0 = arith.constant 0 : i32
    %c0_i32_1 = arith.constant 0 : i32
    %c0_i32_2 = arith.constant 0 : i32
    return %c0_i32, %c0_i32_0, %c0_i32_1 : i32, i32, i32
  }
  func.func @transform_1(%arg0: i32) -> (i32, i32, i32) {
    %c0_i32 = arith.constant 0 : i32
    %c0_i32_0 = arith.constant 0 : i32
    %c0_i32_1 = arith.constant 0 : i32
    %c0_i32_2 = arith.constant 0 : i32
    return %c0_i32, %c0_i32_0, %c0_i32_1 : i32, i32, i32
  }
  func.func @transform_2(%arg0: i32) -> (i32, i32) {
    %c0_i32 = arith.constant 0 : i32
    %c0_i32_0 = arith.constant 0 : i32
    %c0_i32_1 = arith.constant 0 : i32
    return %c0_i32, %c0_i32_0 : i32, i32
  }
  func.func @transform_3(%arg0: i32) -> (i32, i32) {
    %c0_i32 = arith.constant 0 : i32
    %c0_i32_0 = arith.constant 0 : i32
    %c0_i32_1 = arith.constant 0 : i32
    return %c0_i32, %c0_i32_0 : i32, i32
  }
  func.func @transform_4(%arg0: i32) -> (i32, i32) {
    %c0_i32 = arith.constant 0 : i32
    %c0_i32_0 = arith.constant 0 : i32
    %c0_i32_1 = arith.constant 0 : i32
    return %c0_i32, %c0_i32_0 : i32, i32
  }
  func.func @transform_5(%arg0: i32) -> (i32, i32) {
    %c0_i32 = arith.constant 0 : i32
    %c0_i32_0 = arith.constant 0 : i32
    %c0_i32_1 = arith.constant 0 : i32
    return %c0_i32, %c0_i32_0 : i32, i32
  }
  func.func @transform_6(%arg0: i32) -> (i32, i32) {
    %c0_i32 = arith.constant 0 : i32
    %c0_i32_0 = arith.constant 0 : i32
    %c0_i32_1 = arith.constant 0 : i32
    return %c0_i32, %c0_i32_0 : i32, i32
  }
  func.func @transform_7(%arg0: i32) -> (i32, i32) {
    %c0_i32 = arith.constant 0 : i32
    %c0_i32_0 = arith.constant 0 : i32
    %c0_i32_1 = arith.constant 0 : i32
    return %c0_i32, %c0_i32_0 : i32, i32
  }
  func.func @transform_8(%arg0: i32) -> (i32, i32) {
    %c0_i32 = arith.constant 0 : i32
    %c0_i32_0 = arith.constant 0 : i32
    %c0_i32_1 = arith.constant 0 : i32
    return %c0_i32, %c0_i32_0 : i32, i32
  }
  func.func @transform_9(%arg0: i32) -> (i32, i32) {
    %c0_i32 = arith.constant 0 : i32
    %c0_i32_0 = arith.constant 0 : i32
    %c0_i32_1 = arith.constant 0 : i32
    return %c0_i32, %c0_i32_0 : i32, i32
  }
  func.func @transform_10(%arg0: i32) -> (i32, i32) {
    %c0_i32 = arith.constant 0 : i32
    %c0_i32_0 = arith.constant 0 : i32
    %c0_i32_1 = arith.constant 0 : i32
    return %c0_i32, %c0_i32_0 : i32, i32
  }
  func.func @transform_11(%arg0: i32) -> (i32, i32) {
    %c0_i32 = arith.constant 0 : i32
    %c0_i32_0 = arith.constant 0 : i32
    %c0_i32_1 = arith.constant 0 : i32
    return %c0_i32, %c0_i32_0 : i32, i32
  }
  func.func @transform_12(%arg0: i32) -> (i32, i32) {
    %c0_i32 = arith.constant 0 : i32
    %c0_i32_0 = arith.constant 0 : i32
    %c0_i32_1 = arith.constant 0 : i32
    return %c0_i32, %c0_i32_0 : i32, i32
  }
}

</mosaic_0001>

<llo_original>
// kernel: tpu_custom_call.1
$region0: #{tpu_custom_call.1}
  #allocation0 [shape = 'u32[]', space=smem, size = 0x4, offset = 0x4, fixed_abs, tag = 'smem constant byte address 0x4 - core index']
  #allocation1 [shape = 'u32[144,128]{1,0:T(1,128)}', space=vmem, size = 0x12000, scoped, tag = 'internal scratch']
  #allocation2 [shape = 'f32[18,33]{1,0:T(8,128)}', space=vmem, size = 0x3000, scoped, tag = 'scratch operand']
  #allocation3 [shape = 'f32[1,1]{1,0:T(1,128)S(1)}', space=vmem, size = 0x200, scoped, tag = 'scoped memory for tpu_custom_call.1']
  %s0 = inlined_call_operand.vmem [shape: f32[2,16,16], index: 0, kind: input, shape index: {}]
  %s1 = inlined_call_operand.vmem [shape: f32[2,16,1], index: 1, kind: input, shape index: {}]
  %s2 = inlined_call_operand.vmem [shape: f32[48,32], index: 2, kind: input, shape index: {}]
  %s3 = inlined_call_operand.vmem [shape: f32[1,32], index: 3, kind: input, shape index: {}]
  %s4 = inlined_call_operand.vmem [shape: f32[96,32], index: 4, kind: input, shape index: {}]
  %s5 = inlined_call_operand.vmem [shape: f32[1,32], index: 5, kind: input, shape index: {}]
  %s6 = inlined_call_operand.vmem [shape: f32[99,32], index: 6, kind: input, shape index: {}]
  %s7 = inlined_call_operand.vmem [shape: f32[1,32], index: 7, kind: input, shape index: {}]
  %s8 = inlined_call_operand.vmem [shape: f32[96,32], index: 8, kind: input, shape index: {}]
  %s9 = inlined_call_operand.vmem [shape: f32[1,32], index: 9, kind: input, shape index: {}]
  %s10 = inlined_call_operand.vmem [shape: f32[1,32], index: 10, kind: input, shape index: {}]
  %s11 = inlined_call_operand.<no memory space> [shape: f32[1,1], index: 11, kind: input, shape index: {}]
  %s12 = inlined_call_operand.hbm [shape: f32[2,16], index: 12, kind: output, shape index: {}]
  %s13 = sld [smem:[#allocation0]]
  $region58: #{tpu_custom_call.1} parent=0
    _
  %s15 = ssub.s32 1, %s13
  %s16 = scalar_select 0, %s15, %s13
  %v17 = vstv %s11
  %18 = vst [vmem:[#allocation3] sm:$0x1] %v17
  $region1: #{tpu_custom_call.1} parent=0
    #allocation4 [shape = 'u8[1024]{0}', space=vmem, size = 0x400, scoped, tag = 'output window, operand 0, single buffered']
    #allocation5 [shape = 's32[1]{0}', space=sflag, size = 0x4, scoped, tag = 'scoped memory for tpu_custom_call.1']
    %19 = vsyncpa [#allocation5], 0
    // Predicated region
    $region2: #{tpu_custom_call.1} parent=1 // pred_check
      _
    $region3: #{tpu_custom_call.1} parent=1 // pred_check_branch
      %21 = sbr.rel (0) target = $region5
    $region4: #{tpu_custom_call.1} parent=1 // pred_region
      _
    $region5: #{tpu_custom_call.1} parent=1 // pred_fallthru
      _
    // Predicated region
    $region6: #{tpu_custom_call.1} parent=1 // pred_check
      _
    $region7: #{tpu_custom_call.1} parent=1 // pred_check_branch
      %23 = sbr.rel (0) target = $region9
    $region8: #{tpu_custom_call.1} parent=1 // pred_region
      _
    $region9: #{tpu_custom_call.1} parent=1 // pred_fallthru
      _
    // Predicated region
    $region10: #{tpu_custom_call.1} parent=1 // pred_check
      _
    $region11: #{tpu_custom_call.1} parent=1 // pred_check_branch
      %25 = sbr.rel (0) target = $region13
    $region12: #{tpu_custom_call.1} parent=1 // pred_region
      _
    $region13: #{tpu_custom_call.1} parent=1 // pred_fallthru
      _
    // Predicated region
    $region14: #{tpu_custom_call.1} parent=1 // pred_check
      _
    $region15: #{tpu_custom_call.1} parent=1 // pred_check_branch
      %27 = sbr.rel (0) target = $region17
    $region16: #{tpu_custom_call.1} parent=1 // pred_region
      _
    $region17: #{tpu_custom_call.1} parent=1 // pred_fallthru
      _
    // Predicated region
    $region18: #{tpu_custom_call.1} parent=1 // pred_check
      _
    $region19: #{tpu_custom_call.1} parent=1 // pred_check_branch
      %29 = sbr.rel (0) target = $region21
    $region20: #{tpu_custom_call.1} parent=1 // pred_region
      _
    $region21: #{tpu_custom_call.1} parent=1 // pred_fallthru
      _
    // Predicated region
    $region22: #{tpu_custom_call.1} parent=1 // pred_check
      _
    $region23: #{tpu_custom_call.1} parent=1 // pred_check_branch
      %31 = sbr.rel (0) target = $region25
    $region24: #{tpu_custom_call.1} parent=1 // pred_region
      _
    $region25: #{tpu_custom_call.1} parent=1 // pred_fallthru
      _
    // Predicated region
    $region26: #{tpu_custom_call.1} parent=1 // pred_check
      _
    $region27: #{tpu_custom_call.1} parent=1 // pred_check_branch
      %33 = sbr.rel (0) target = $region29
    $region28: #{tpu_custom_call.1} parent=1 // pred_region
      _
    $region29: #{tpu_custom_call.1} parent=1 // pred_fallthru
      _
    // Predicated region
    $region30: #{tpu_custom_call.1} parent=1 // pred_check
      _
    $region31: #{tpu_custom_call.1} parent=1 // pred_check_branch
      %35 = sbr.rel (0) target = $region33
    $region32: #{tpu_custom_call.1} parent=1 // pred_region
      _
    $region33: #{tpu_custom_call.1} parent=1 // pred_fallthru
      _
    // Predicated region
    $region34: #{tpu_custom_call.1} parent=1 // pred_check
      _
    $region35: #{tpu_custom_call.1} parent=1 // pred_check_branch
      %37 = sbr.rel (0) target = $region37
    $region36: #{tpu_custom_call.1} parent=1 // pred_region
      _
    $region37: #{tpu_custom_call.1} parent=1 // pred_fallthru
      _
    // Predicated region
    $region38: #{tpu_custom_call.1} parent=1 // pred_check
      _
    $region39: #{tpu_custom_call.1} parent=1 // pred_check_branch
      %39 = sbr.rel (0) target = $region41
    $region40: #{tpu_custom_call.1} parent=1 // pred_region
      _
    $region41: #{tpu_custom_call.1} parent=1 // pred_fallthru
      _
    // Predicated region
    $region42: #{tpu_custom_call.1} parent=1 // pred_check
      _
    $region43: #{tpu_custom_call.1} parent=1 // pred_check_branch
      %41 = sbr.rel (0) target = $region45
    $region44: #{tpu_custom_call.1} parent=1 // pred_region
      _
    $region45: #{tpu_custom_call.1} parent=1 // pred_fallthru
      _
    // Predicated region
    $region46: #{tpu_custom_call.1} parent=1 // pred_check
      _
    $region47: #{tpu_custom_call.1} parent=1 // pred_check_branch
      %43 = sbr.rel (0) target = $region49
    $region48: #{tpu_custom_call.1} parent=1 // pred_region
      _
    $region49: #{tpu_custom_call.1} parent=1 // pred_fallthru
      _
    %v44 = vld [vmem:[%s0] sm:$0xff]
    %v45 = vld [vmem:[%s0 + $0x8] sm:$0xff]
    %vm46 = vcmask 269312
    %47 = vst.msk [vmem:[#allocation2] sm:$0xff] %vm46, 0.0
    %48 = vst.msk [vmem:[#allocation2 + $0x8] sm:$0xff] %vm46, 0.0
    %vm49 = vcmask 263168
    %50 = vst.msk [vmem:[#allocation2 + $0x10] sm:$0x3] %vm49, 0.0
    %vm51 = vcmask 130048
    %52 = vst.msk [vmem:[#allocation2 + $0x1] sm:$0xff] %vm51, %v44
    %53 = vst.msk [vmem:[#allocation2 + $0x9] sm:$0xff] %vm51, %v45
    %v54 = vld [vmem:[#allocation2] sm:$0xff]
    %v55 = vld [vmem:[#allocation2 + $0x8] sm:$0xff]
    %v56 = vld [vmem:[#allocation2 + $0x1] sm:$0xff]
    %v57 = vld [vmem:[#allocation2 + $0x9] sm:$0xff]
    %v58 = vld [vmem:[#allocation2 + $0x2] sm:$0xff]
    %v59 = vld [vmem:[#allocation2 + $0xa] sm:$0xff]
    %62 = vrot.lane.b32.xlu0 %v56, 16
    %v63 = vpop.permute.xlu0 %62
    %64 = vrot.lane.b32.xlu0 %v57, 16
    %v65 = vpop.permute.xlu0 %64
    %70 = vrot.lane.b32.xlu0 %v58, 32
    %v71 = vpop.permute.xlu0 %70
    %72 = vrot.lane.b32.xlu0 %v59, 32
    %v73 = vpop.permute.xlu0 %72
    %v76 = vsel %vm51, %v54, %v63
    %v77 = vsel %vm51, %v55, %v65
    %vm78 = vcmask 261120
    %v79 = vsel %vm78, %v76, %v71
    %v80 = vsel %vm78, %v77, %v73
    %v81 = vld [vmem:[%s2] sm:$0xff]
    %v82 = vld [vmem:[%s2 + $0x8] sm:$0xff]
    %v83 = vld [vmem:[%s2 + $0x10] sm:$0xff]
    %v84 = vld [vmem:[%s2 + $0x18] sm:$0xff]
    %v85 = vld [vmem:[%s2 + $0x20] sm:$0xff]
    %v86 = vld [vmem:[%s2 + $0x28] sm:$0xff]
    %v87 = vld [vmem:[%s3] sm:$0x1]
    %v89 = vlaneseq
    %v90 = vshrl.u32 %v89, 7
    %v91 = vsub.s32 0, %v90
    %v92 = vrot.slane %v87, %v91
    %vm94 = vcmask 392192
    %v96 = vsel %vm94, %v79, 0
    %v99 = vsel %vm94, %v80, 0
    %101 = vmatprep.subr.mxu0 0.0
    %102 = vmatpush1.msra.mxu0 %v81
    %103 = vmatprep.subr.mxu0 0.0
    %104 = vmatpush1.msra.mxu0 %v82
    %105 = vmatprep.subr.mxu0 0.0
    %106 = vmatpush1.msra.mxu0 %v83
    %107 = vmatprep.subr.mxu0 0.0
    %108 = vmatpush1.msra.mxu0 %v84
    %109 = vmatprep.subr.mxu0 0.0
    %110 = vmatpush1.msra.mxu0 %v85
    %111 = vmatprep.subr.mxu0 0.0
    %112 = vmatpush1.msra.mxu0 %v86
    %113 = vmatprep.subr.mxu0 0.0
    %114 = vmatpush1.msra.mxu0 0.0
    %115 = vmatprep.subr.mxu0 0.0
    %116 = vmatpush1.msra.mxu0 0.0
    %117 = vmatprep.subr.mxu0 0.0
    %118 = vmatpush1.msra.mxu0 0.0
    %119 = vmatprep.subr.mxu0 0.0
    %120 = vmatpush1.msra.mxu0 0.0
    %121 = vmatprep.subr.mxu0 0.0
    %122 = vmatpush1.msra.mxu0 0.0
    %123 = vmatprep.subr.mxu0 0.0
    %124 = vmatpush1.msra.mxu0 0.0
    %125 = vmatprep.subr.mxu0 0.0
    %126 = vmatpush1.msra.mxu0 0.0
    %127 = vmatprep.subr.mxu0 0.0
    %128 = vmatpush1.msra.mxu0 0.0
    %129 = vmatprep.subr.mxu0 0.0
    %130 = vmatpush1.msra.mxu0 0.0
    %131 = vmatprep.subr.mxu0 0.0
    %132 = vmatpush1.msra.mxu0 0.0
    %133 = vmatprep.subr.mxu0 0.0
    %134 = vmatpush1.msra.mxu0 0.0
    %135 = vmatprep.subr.mxu0 0.0
    %136 = vmatpush1.msra.mxu0 0.0
    %137 = vmatprep.subr.mxu0 0.0
    %138 = vmatpush1.msra.mxu0 0.0
    %139 = vmatprep.subr.mxu0 0.0
    %140 = vmatpush1.msra.mxu0 0.0
    %141 = vmatprep.subr.mxu0 0.0
    %142 = vmatpush1.msra.mxu0 0.0
    %143 = vmatprep.subr.mxu0 0.0
    %144 = vmatpush1.msra.mxu0 0.0
    %145 = vmatprep.subr.mxu0 0.0
    %146 = vmatpush1.msra.mxu0 0.0
    %147 = vmatprep.subr.mxu0 0.0
    %148 = vmatpush1.msra.mxu0 0.0
    %149 = vmatprep.subr.mxu0 0.0
    %150 = vmatpush1.msra.mxu0 0.0
    %151 = vmatprep.subr.mxu0 0.0
    %152 = vmatpush1.msra.mxu0 0.0
    %153 = vmatprep.subr.mxu0 0.0
    %154 = vmatpush1.msra.mxu0 0.0
    %155 = vmatprep.subr.mxu0 0.0
    %156 = vmatpush1.msra.mxu0 0.0
    %157 = vmatprep.subr.mxu0 0.0
    %158 = vmatpush1.msra.mxu0 0.0
    %159 = vmatprep.subr.mxu0 0.0
    %160 = vmatpush1.msra.mxu0 0.0
    %161 = vmatprep.subr.mxu0 0.0
    %162 = vmatpush1.msra.mxu0 0.0
    %163 = vmatprep.subr.mxu0 0.0
    %164 = vmatpush1.msra.mxu0 0.0
    %165 = vmatprep.mubr.f32.mxu0 0.0
    %166 = vmatmul.mubr.f32.gmra.mrb[0].mxu0 %v96
    %v167 = vpop.f32.mrb[0].mxu0
    %v168 = vadd.f32 %v92, %v167
    %v169 = vpop.f32.mrb[0].mxu0
    %170 = vmatprep.mubr.f32.mxu0 0.0
    %171 = vmatmul.mubr.f32.gmra.mrb[0].mxu0 %v99
    %v172 = vpop.f32.mrb[0].mxu0
    %v173 = vadd.f32 %v92, %v172
    %v174 = vpop.f32.mrb[0].mxu0
    %175 = vdwg.mxu0
    %v176 = vmax.f32 %v168, 0.0
    %v177 = vmax.f32 %v173, 0.0
    %178 = vst.msk [vmem:[#allocation2] sm:$0xff] %vm46, 0.0
    %179 = vst.msk [vmem:[#allocation2 + $0x8] sm:$0xff] %vm46, 0.0
    %180 = vst.msk [vmem:[#allocation2 + $0x10] sm:$0x3] %vm49, 0.0
    %181 = vst.msk [vmem:[#allocation2 + $0x1] sm:$0xff] %vm78, %v176
    %182 = vst.msk [vmem:[#allocation2 + $0x9] sm:$0xff] %vm78, %v177
    %v183 = vld [vmem:[#allocation2] sm:$0xff]
    %v184 = vld [vmem:[#allocation2 + $0x8] sm:$0xff]
    %v185 = vld [vmem:[#allocation2 + $0x1] sm:$0xff]
    %v186 = vld [vmem:[#allocation2 + $0x9] sm:$0xff]
    %v187 = vld [vmem:[#allocation2 + $0x2] sm:$0xff]
    %v188 = vld [vmem:[#allocation2 + $0xa] sm:$0xff]
    %191 = vrot.lane.b32.xlu0 %v185, 32
    %v192 = vpop.permute.xlu0 %191
    %193 = vrot.lane.b32.xlu0 %v186, 32
    %v194 = vpop.permute.xlu0 %193
    %199 = vrot.lane.b32.xlu0 %v187, 64
    %v200 = vpop.permute.xlu0 %199
    %201 = vrot.lane.b32.xlu0 %v188, 64
    %v202 = vpop.permute.xlu0 %201
    %v205 = vsel %vm78, %v183, %v192
    %v206 = vsel %vm78, %v184, %v194
    %vm207 = vcmask 523264
    %v208 = vsel %vm207, %v205, %v200
    %v209 = vsel %vm207, %v206, %v202
    %v210 = vld [vmem:[%s4] sm:$0xff]
    %v211 = vld [vmem:[%s4 + $0x8] sm:$0xff]
    %v212 = vld [vmem:[%s4 + $0x10] sm:$0xff]
    %v213 = vld [vmem:[%s4 + $0x18] sm:$0xff]
    %v214 = vld [vmem:[%s4 + $0x20] sm:$0xff]
    %v215 = vld [vmem:[%s4 + $0x28] sm:$0xff]
    %v216 = vld [vmem:[%s4 + $0x30] sm:$0xff]
    %v217 = vld [vmem:[%s4 + $0x38] sm:$0xff]
    %v218 = vld [vmem:[%s4 + $0x40] sm:$0xff]
    %v219 = vld [vmem:[%s4 + $0x48] sm:$0xff]
    %v220 = vld [vmem:[%s4 + $0x50] sm:$0xff]
    %v221 = vld [vmem:[%s4 + $0x58] sm:$0xff]
    %v222 = vld [vmem:[%s5] sm:$0x1]
    %v224 = vlaneseq
    %v225 = vshrl.u32 %v224, 7
    %v226 = vsub.s32 0, %v225
    %v227 = vrot.slane %v222, %v226
    %vm229 = vcmask 785408
    %v231 = vsel %vm229, %v208, 0
    %v234 = vsel %vm229, %v209, 0
    %236 = vmatprep.subr.mxu0 0.0
    %237 = vmatpush1.msra.mxu0 %v210
    %238 = vmatprep.subr.mxu0 0.0
    %239 = vmatpush1.msra.mxu0 %v211
    %240 = vmatprep.subr.mxu0 0.0
    %241 = vmatpush1.msra.mxu0 %v212
    %242 = vmatprep.subr.mxu0 0.0
    %243 = vmatpush1.msra.mxu0 %v213
    %244 = vmatprep.subr.mxu0 0.0
    %245 = vmatpush1.msra.mxu0 %v214
    %246 = vmatprep.subr.mxu0 0.0
    %247 = vmatpush1.msra.mxu0 %v215
    %248 = vmatprep.subr.mxu0 0.0
    %249 = vmatpush1.msra.mxu0 %v216
    %250 = vmatprep.subr.mxu0 0.0
    %251 = vmatpush1.msra.mxu0 %v217
    %252 = vmatprep.subr.mxu0 0.0
    %253 = vmatpush1.msra.mxu0 %v218
    %254 = vmatprep.subr.mxu0 0.0
    %255 = vmatpush1.msra.mxu0 %v219
    %256 = vmatprep.subr.mxu0 0.0
    %257 = vmatpush1.msra.mxu0 %v220
    %258 = vmatprep.subr.mxu0 0.0
    %259 = vmatpush1.msra.mxu0 %v221
    %260 = vmatprep.subr.mxu0 0.0
    %261 = vmatpush1.msra.mxu0 0.0
    %262 = vmatprep.subr.mxu0 0.0
    %263 = vmatpush1.msra.mxu0 0.0
    %264 = vmatprep.subr.mxu0 0.0
    %265 = vmatpush1.msra.mxu0 0.0
    %266 = vmatprep.subr.mxu0 0.0
    %267 = vmatpush1.msra.mxu0 0.0
    %268 = vmatprep.subr.mxu0 0.0
    %269 = vmatpush1.msra.mxu0 0.0
    %270 = vmatprep.subr.mxu0 0.0
    %271 = vmatpush1.msra.mxu0 0.0
    %272 = vmatprep.subr.mxu0 0.0
    %273 = vmatpush1.msra.mxu0 0.0
    %274 = vmatprep.subr.mxu0 0.0
    %275 = vmatpush1.msra.mxu0 0.0
    %276 = vmatprep.subr.mxu0 0.0
    %277 = vmatpush1.msra.mxu0 0.0
    %278 = vmatprep.subr.mxu0 0.0
    %279 = vmatpush1.msra.mxu0 0.0
    %280 = vmatprep.subr.mxu0 0.0
    %281 = vmatpush1.msra.mxu0 0.0
    %282 = vmatprep.subr.mxu0 0.0
    %283 = vmatpush1.msra.mxu0 0.0
    %284 = vmatprep.subr.mxu0 0.0
    %285 = vmatpush1.msra.mxu0 0.0
    %286 = vmatprep.subr.mxu0 0.0
    %287 = vmatpush1.msra.mxu0 0.0
    %288 = vmatprep.subr.mxu0 0.0
    %289 = vmatpush1.msra.mxu0 0.0
    %290 = vmatprep.subr.mxu0 0.0
    %291 = vmatpush1.msra.mxu0 0.0
    %292 = vmatprep.subr.mxu0 0.0
    %293 = vmatpush1.msra.mxu0 0.0
    %294 = vmatprep.subr.mxu0 0.0
    %295 = vmatpush1.msra.mxu0 0.0
    %296 = vmatprep.subr.mxu0 0.0
    %297 = vmatpush1.msra.mxu0 0.0
    %298 = vmatprep.subr.mxu0 0.0
    %299 = vmatpush1.msra.mxu0 0.0
    %300 = vmatprep.mubr.f32.mxu0 0.0
    %301 = vmatmul.mubr.f32.gmra.mrb[0].mxu0 %v231
    %v302 = vpop.f32.mrb[0].mxu0
    %v303 = vadd.f32 %v227, %v302
    %v304 = vpop.f32.mrb[0].mxu0
    %305 = vmatprep.mubr.f32.mxu0 0.0
    %306 = vmatmul.mubr.f32.gmra.mrb[0].mxu0 %v234
    %v307 = vpop.f32.mrb[0].mxu0
    %v308 = vadd.f32 %v227, %v307
    %v309 = vpop.f32.mrb[0].mxu0
    %310 = vdwg.mxu0
    %v311 = vmax.f32 %v303, 0.0
    %v312 = vmax.f32 %v308, 0.0
    %313 = vst.msk [vmem:[#allocation2] sm:$0xff] %vm46, 0.0
    %314 = vst.msk [vmem:[#allocation2 + $0x8] sm:$0xff] %vm46, 0.0
    %315 = vst.msk [vmem:[#allocation2 + $0x10] sm:$0x3] %vm49, 0.0
    %316 = vst.msk [vmem:[#allocation2 + $0x1] sm:$0xff] %vm78, %v311
    %317 = vst.msk [vmem:[#allocation2 + $0x9] sm:$0xff] %vm78, %v312
    %v318 = vld [vmem:[%s1] sm:$0xff]
    %v319 = vld [vmem:[%s1 + $0x8] sm:$0xff]
    %322 = vrot.lane.b32.xlu0 %v318, 32
    %v323 = vpop.permute.xlu0 %322
    %324 = vrot.lane.b32.xlu0 %v319, 32
    %v325 = vpop.permute.xlu0 %324
    %vm328 = vcmask 269568
    %329 = vst.msk [vmem:[#allocation2 + $0x1] sm:$0xff] %vm328, %v323
    %330 = vst.msk [vmem:[#allocation2 + $0x9] sm:$0xff] %vm328, %v325
    %v331 = vld [vmem:[#allocation2] sm:$0xff]
    %v332 = vld [vmem:[#allocation2 + $0x8] sm:$0xff]
    %v333 = vld [vmem:[#allocation2 + $0x1] sm:$0xff]
    %v334 = vld [vmem:[#allocation2 + $0x9] sm:$0xff]
    %v335 = vld [vmem:[#allocation2 + $0x2] sm:$0xff]
    %v336 = vld [vmem:[#allocation2 + $0xa] sm:$0xff]
    %339 = vrot.lane.b32.xlu0 %v333, 33
    %v340 = vpop.permute.xlu0 %339
    %341 = vrot.lane.b32.xlu0 %v334, 33
    %v342 = vpop.permute.xlu0 %341
    %347 = vrot.lane.b32.xlu0 %v335, 66
    %v348 = vpop.permute.xlu0 %347
    %349 = vrot.lane.b32.xlu0 %v336, 66
    %v350 = vpop.permute.xlu0 %349
    %v353 = vsel %vm46, %v331, %v340
    %v354 = vsel %vm46, %v332, %v342
    %vm355 = vcmask 539648
    %v356 = vsel %vm355, %v353, %v348
    %v357 = vsel %vm355, %v354, %v350
    %v358 = vld [vmem:[%s6] sm:$0xff]
    %v359 = vld [vmem:[%s6 + $0x8] sm:$0xff]
    %v360 = vld [vmem:[%s6 + $0x10] sm:$0xff]
    %v361 = vld [vmem:[%s6 + $0x18] sm:$0xff]
    %v362 = vld [vmem:[%s6 + $0x20] sm:$0xff]
    %v363 = vld [vmem:[%s6 + $0x28] sm:$0xff]
    %v364 = vld [vmem:[%s6 + $0x30] sm:$0xff]
    %v365 = vld [vmem:[%s6 + $0x38] sm:$0xff]
    %v366 = vld [vmem:[%s6 + $0x40] sm:$0xff]
    %v367 = vld [vmem:[%s6 + $0x48] sm:$0xff]
    %v368 = vld [vmem:[%s6 + $0x50] sm:$0xff]
    %v369 = vld [vmem:[%s6 + $0x58] sm:$0xff]
    %v370 = vld [vmem:[%s6 + $0x60] sm:$0x7]
    %v371 = vld [vmem:[%s7] sm:$0x1]
    %v373 = vlaneseq
    %v374 = vshrl.u32 %v373, 7
    %v375 = vsub.s32 0, %v374
    %v376 = vrot.slane %v371, %v375
    %vm378 = vcmask 809984
    %v380 = vsel %vm378, %v356, 0
    %v383 = vsel %vm378, %v357, 0
    %vm385 = vcmask 1042432
    %v387 = vsel %vm385, %v370, 0
    %389 = vmatprep.subr.mxu0 0.0
    %390 = vmatpush1.msra.mxu0 %v358
    %391 = vmatprep.subr.mxu0 0.0
    %392 = vmatpush1.msra.mxu0 %v359
    %393 = vmatprep.subr.mxu0 0.0
    %394 = vmatpush1.msra.mxu0 %v360
    %395 = vmatprep.subr.mxu0 0.0
    %396 = vmatpush1.msra.mxu0 %v361
    %397 = vmatprep.subr.mxu0 0.0
    %398 = vmatpush1.msra.mxu0 %v362
    %399 = vmatprep.subr.mxu0 0.0
    %400 = vmatpush1.msra.mxu0 %v363
    %401 = vmatprep.subr.mxu0 0.0
    %402 = vmatpush1.msra.mxu0 %v364
    %403 = vmatprep.subr.mxu0 0.0
    %404 = vmatpush1.msra.mxu0 %v365
    %405 = vmatprep.subr.mxu0 0.0
    %406 = vmatpush1.msra.mxu0 %v366
    %407 = vmatprep.subr.mxu0 0.0
    %408 = vmatpush1.msra.mxu0 %v367
    %409 = vmatprep.subr.mxu0 0.0
    %410 = vmatpush1.msra.mxu0 %v368
    %411 = vmatprep.subr.mxu0 0.0
    %412 = vmatpush1.msra.mxu0 %v369
    %413 = vmatprep.subr.mxu0 0.0
    %414 = vmatpush1.msra.mxu0 %v387
    %415 = vmatprep.subr.mxu0 0.0
    %416 = vmatpush1.msra.mxu0 0.0
    %417 = vmatprep.subr.mxu0 0.0
    %418 = vmatpush1.msra.mxu0 0.0
    %419 = vmatprep.subr.mxu0 0.0
    %420 = vmatpush1.msra.mxu0 0.0
    %421 = vmatprep.subr.mxu0 0.0
    %422 = vmatpush1.msra.mxu0 0.0
    %423 = vmatprep.subr.mxu0 0.0
    %424 = vmatpush1.msra.mxu0 0.0
    %425 = vmatprep.subr.mxu0 0.0
    %426 = vmatpush1.msra.mxu0 0.0
    %427 = vmatprep.subr.mxu0 0.0
    %428 = vmatpush1.msra.mxu0 0.0
    %429 = vmatprep.subr.mxu0 0.0
    %430 = vmatpush1.msra.mxu0 0.0
    %431 = vmatprep.subr.mxu0 0.0
    %432 = vmatpush1.msra.mxu0 0.0
    %433 = vmatprep.subr.mxu0 0.0
    %434 = vmatpush1.msra.mxu0 0.0
    %435 = vmatprep.subr.mxu0 0.0
    %436 = vmatpush1.msra.mxu0 0.0
    %437 = vmatprep.subr.mxu0 0.0
    %438 = vmatpush1.msra.mxu0 0.0
    %439 = vmatprep.subr.mxu0 0.0
    %440 = vmatpush1.msra.mxu0 0.0
    %441 = vmatprep.subr.mxu0 0.0
    %442 = vmatpush1.msra.mxu0 0.0
    %443 = vmatprep.subr.mxu0 0.0
    %444 = vmatpush1.msra.mxu0 0.0
    %445 = vmatprep.subr.mxu0 0.0
    %446 = vmatpush1.msra.mxu0 0.0
    %447 = vmatprep.subr.mxu0 0.0
    %448 = vmatpush1.msra.mxu0 0.0
    %449 = vmatprep.subr.mxu0 0.0
    %450 = vmatpush1.msra.mxu0 0.0
    %451 = vmatprep.subr.mxu0 0.0
    %452 = vmatpush1.msra.mxu0 0.0
    %453 = vmatprep.mubr.f32.mxu0 0.0
    %454 = vmatmul.mubr.f32.gmra.mrb[0].mxu0 %v380
    %v455 = vpop.f32.mrb[0].mxu0
    %v456 = vadd.f32 %v376, %v455
    %v457 = vpop.f32.mrb[0].mxu0
    %458 = vmatprep.mubr.f32.mxu0 0.0
    %459 = vmatmul.mubr.f32.gmra.mrb[0].mxu0 %v383
    %v460 = vpop.f32.mrb[0].mxu0
    %v461 = vadd.f32 %v376, %v460
    %v462 = vpop.f32.mrb[0].mxu0
    %463 = vdwg.mxu0
    %v464 = vmax.f32 %v456, 0.0
    %v465 = vmax.f32 %v461, 0.0
    %466 = vst.msk [vmem:[#allocation2] sm:$0xff] %vm46, 0.0
    %467 = vst.msk [vmem:[#allocation2 + $0x8] sm:$0xff] %vm46, 0.0
    %468 = vst.msk [vmem:[#allocation2 + $0x10] sm:$0x3] %vm49, 0.0
    %469 = vst.msk [vmem:[#allocation2 + $0x1] sm:$0xff] %vm78, %v464
    %470 = vst.msk [vmem:[#allocation2 + $0x9] sm:$0xff] %vm78, %v465
    %v471 = vld [vmem:[#allocation2] sm:$0xff]
    %v472 = vld [vmem:[#allocation2 + $0x8] sm:$0xff]
    %v473 = vld [vmem:[#allocation2 + $0x1] sm:$0xff]
    %v474 = vld [vmem:[#allocation2 + $0x9] sm:$0xff]
    %v475 = vld [vmem:[#allocation2 + $0x2] sm:$0xff]
    %v476 = vld [vmem:[#allocation2 + $0xa] sm:$0xff]
    %479 = vrot.lane.b32.xlu0 %v473, 32
    %v480 = vpop.permute.xlu0 %479
    %481 = vrot.lane.b32.xlu0 %v474, 32
    %v482 = vpop.permute.xlu0 %481
    %487 = vrot.lane.b32.xlu0 %v475, 64
    %v488 = vpop.permute.xlu0 %487
    %489 = vrot.lane.b32.xlu0 %v476, 64
    %v490 = vpop.permute.xlu0 %489
    %v493 = vsel %vm78, %v471, %v480
    %v494 = vsel %vm78, %v472, %v482
    %v495 = vsel %vm207, %v493, %v488
    %v496 = vsel %vm207, %v494, %v490
    %v497 = vld [vmem:[%s8] sm:$0xff]
    %v498 = vld [vmem:[%s8 + $0x8] sm:$0xff]
    %v499 = vld [vmem:[%s8 + $0x10] sm:$0xff]
    %v500 = vld [vmem:[%s8 + $0x18] sm:$0xff]
    %v501 = vld [vmem:[%s8 + $0x20] sm:$0xff]
    %v502 = vld [vmem:[%s8 + $0x28] sm:$0xff]
    %v503 = vld [vmem:[%s8 + $0x30] sm:$0xff]
    %v504 = vld [vmem:[%s8 + $0x38] sm:$0xff]
    %v505 = vld [vmem:[%s8 + $0x40] sm:$0xff]
    %v506 = vld [vmem:[%s8 + $0x48] sm:$0xff]
    %v507 = vld [vmem:[%s8 + $0x50] sm:$0xff]
    %v508 = vld [vmem:[%s8 + $0x58] sm:$0xff]
    %v509 = vld [vmem:[%s9] sm:$0x1]
    %v511 = vlaneseq
    %v512 = vshrl.u32 %v511, 7
    %v513 = vsub.s32 0, %v512
    %v514 = vrot.slane %v509, %v513
    %v517 = vsel %vm229, %v495, 0
    %v520 = vsel %vm229, %v496, 0
    %522 = vmatprep.subr.mxu0 0.0
    %523 = vmatpush1.msra.mxu0 %v497
    %524 = vmatprep.subr.mxu0 0.0
    %525 = vmatpush1.msra.mxu0 %v498
    %526 = vmatprep.subr.mxu0 0.0
    %527 = vmatpush1.msra.mxu0 %v499
    %528 = vmatprep.subr.mxu0 0.0
    %529 = vmatpush1.msra.mxu0 %v500
    %530 = vmatprep.subr.mxu0 0.0
    %531 = vmatpush1.msra.mxu0 %v501
    %532 = vmatprep.subr.mxu0 0.0
    %533 = vmatpush1.msra.mxu0 %v502
    %534 = vmatprep.subr.mxu0 0.0
    %535 = vmatpush1.msra.mxu0 %v503
    %536 = vmatprep.subr.mxu0 0.0
    %537 = vmatpush1.msra.mxu0 %v504
    %538 = vmatprep.subr.mxu0 0.0
    %539 = vmatpush1.msra.mxu0 %v505
    %540 = vmatprep.subr.mxu0 0.0
    %541 = vmatpush1.msra.mxu0 %v506
    %542 = vmatprep.subr.mxu0 0.0
    %543 = vmatpush1.msra.mxu0 %v507
    %544 = vmatprep.subr.mxu0 0.0
    %545 = vmatpush1.msra.mxu0 %v508
    %546 = vmatprep.subr.mxu0 0.0
    %547 = vmatpush1.msra.mxu0 0.0
    %548 = vmatprep.subr.mxu0 0.0
    %549 = vmatpush1.msra.mxu0 0.0
    %550 = vmatprep.subr.mxu0 0.0
    %551 = vmatpush1.msra.mxu0 0.0
    %552 = vmatprep.subr.mxu0 0.0
    %553 = vmatpush1.msra.mxu0 0.0
    %554 = vmatprep.subr.mxu0 0.0
    %555 = vmatpush1.msra.mxu0 0.0
    %556 = vmatprep.subr.mxu0 0.0
    %557 = vmatpush1.msra.mxu0 0.0
    %558 = vmatprep.subr.mxu0 0.0
    %559 = vmatpush1.msra.mxu0 0.0
    %560 = vmatprep.subr.mxu0 0.0
    %561 = vmatpush1.msra.mxu0 0.0
    %562 = vmatprep.subr.mxu0 0.0
    %563 = vmatpush1.msra.mxu0 0.0
    %564 = vmatprep.subr.mxu0 0.0
    %565 = vmatpush1.msra.mxu0 0.0
    %566 = vmatprep.subr.mxu0 0.0
    %567 = vmatpush1.msra.mxu0 0.0
    %568 = vmatprep.subr.mxu0 0.0
    %569 = vmatpush1.msra.mxu0 0.0
    %570 = vmatprep.subr.mxu0 0.0
    %571 = vmatpush1.msra.mxu0 0.0
    %572 = vmatprep.subr.mxu0 0.0
    %573 = vmatpush1.msra.mxu0 0.0
    %574 = vmatprep.subr.mxu0 0.0
    %575 = vmatpush1.msra.mxu0 0.0
    %576 = vmatprep.subr.mxu0 0.0
    %577 = vmatpush1.msra.mxu0 0.0
    %578 = vmatprep.subr.mxu0 0.0
    %579 = vmatpush1.msra.mxu0 0.0
    %580 = vmatprep.subr.mxu0 0.0
    %581 = vmatpush1.msra.mxu0 0.0
    %582 = vmatprep.subr.mxu0 0.0
    %583 = vmatpush1.msra.mxu0 0.0
    %584 = vmatprep.subr.mxu0 0.0
    %585 = vmatpush1.msra.mxu0 0.0
    %586 = vmatprep.mubr.f32.mxu0 0.0
    %587 = vmatmul.mubr.f32.gmra.mrb[0].mxu0 %v517
    %v588 = vpop.f32.mrb[0].mxu0
    %v589 = vadd.f32 %v514, %v588
    %v590 = vpop.f32.mrb[0].mxu0
    %591 = vmatprep.mubr.f32.mxu0 0.0
    %592 = vmatmul.mubr.f32.gmra.mrb[0].mxu0 %v520
    %v593 = vpop.f32.mrb[0].mxu0
    %v594 = vadd.f32 %v514, %v593
    %v595 = vpop.f32.mrb[0].mxu0
    %596 = vdwg.mxu0
    %v597 = vmax.f32 %v589, 0.0
    %v598 = vmax.f32 %v594, 0.0
    %v599 = vld [vmem:[%s10] sm:$0x1]
    %v601 = vlaneseq
    %v602 = vshrl.u32 %v601, 7
    %v603 = vsub.s32 0, %v602
    %v604 = vrot.slane %v599, %v603
    %v606 = vmul.f32 %v597, %v604
    %v607 = vmul.f32 %v598, %v604
    %v608 = vsel %vm78, %v606, 0.0
    %609 = vadd.xlane.f32.xlu0 %v608
    %v610 = vpop.xlane.xlu0 %609
    %v611 = vsel %vm78, %v607, 0.0
    %612 = vadd.xlane.f32.xlu0 %v611
    %v613 = vpop.xlane.xlu0 %612
    %v614 = vld [vmem:[#allocation3] sm:$0x1]
    %v616 = vlaneseq
    %v617 = vshrl.u32 %v616, 7
    %v618 = vsub.s32 0, %v617
    %v619 = vrot.slane %v614, %v618
    %v621 = vadd.f32 %v610, %v619
    %v622 = vadd.f32 %v613, %v619
    %625 = vset.pattern.permute.xlu0 0
    %626 = vperm.xlu0 %625, %v621
    %v627 = vpop.permute.xlu0 %626
    %628 = vset.pattern.permute.xlu0 0
    %629 = vperm.xlu0 %628, %v622
    %v630 = vpop.permute.xlu0 %629
    %v631 = vlaneseq
    %v632 = vand.u32 %v631, 127
    %v633 = vlaneseq
    %v634 = vshrl.u32 %v633, 7
    %v635 = vsub.s32 %v632, %v634
    %v636 = vrot.slane %v627, %v635
    %v637 = vadd.s32 %v632, 4294967288
    %v638 = vlaneseq
    %v639 = vshrl.u32 %v638, 7
    %v640 = vsub.s32 %v637, %v639
    %v641 = vrot.slane %v630, %v640
    %vm642 = vcmask 130112
    %v643 = vsel %vm642, %v641, %v636
    %vm645 = vcmask 122880
    %646 = vst.msk [vmem:[#allocation4] sm:$0x1] %vm645, %v643
    %s647 = scalar_lea.vmem %s0, 16
    %v648 = vld [vmem:[%s647] sm:$0xff]
    %v649 = vld [vmem:[%s647 + $0x8] sm:$0xff]
    %650 = vst.msk [vmem:[#allocation2] sm:$0xff] %vm46, 0.0
    %651 = vst.msk [vmem:[#allocation2 + $0x8] sm:$0xff] %vm46, 0.0
    %652 = vst.msk [vmem:[#allocation2 + $0x10] sm:$0x3] %vm49, 0.0
    %653 = vst.msk [vmem:[#allocation2 + $0x1] sm:$0xff] %vm51, %v648
    %654 = vst.msk [vmem:[#allocation2 + $0x9] sm:$0xff] %vm51, %v649
    %v655 = vld [vmem:[#allocation2] sm:$0xff]
    %v656 = vld [vmem:[#allocation2 + $0x8] sm:$0xff]
    %v657 = vld [vmem:[#allocation2 + $0x1] sm:$0xff]
    %v658 = vld [vmem:[#allocation2 + $0x9] sm:$0xff]
    %v659 = vld [vmem:[#allocation2 + $0x2] sm:$0xff]
    %v660 = vld [vmem:[#allocation2 + $0xa] sm:$0xff]
    %663 = vrot.lane.b32.xlu0 %v657, 16
    %v664 = vpop.permute.xlu0 %663
    %665 = vrot.lane.b32.xlu0 %v658, 16
    %v666 = vpop.permute.xlu0 %665
    %671 = vrot.lane.b32.xlu0 %v659, 32
    %v672 = vpop.permute.xlu0 %671
    %673 = vrot.lane.b32.xlu0 %v660, 32
    %v674 = vpop.permute.xlu0 %673
    %v677 = vsel %vm51, %v655, %v664
    %v678 = vsel %vm51, %v656, %v666
    %v679 = vsel %vm78, %v677, %v672
    %v680 = vsel %vm78, %v678, %v674
    %v681 = vld [vmem:[%s2] sm:$0xff]
    %v682 = vld [vmem:[%s2 + $0x8] sm:$0xff]
    %v683 = vld [vmem:[%s2 + $0x10] sm:$0xff]
    %v684 = vld [vmem:[%s2 + $0x18] sm:$0xff]
    %v685 = vld [vmem:[%s2 + $0x20] sm:$0xff]
    %v686 = vld [vmem:[%s2 + $0x28] sm:$0xff]
    %v687 = vld [vmem:[%s3] sm:$0x1]
    %v689 = vlaneseq
    %v690 = vshrl.u32 %v689, 7
    %v691 = vsub.s32 0, %v690
    %v692 = vrot.slane %v687, %v691
    %v695 = vsel %vm94, %v679, 0
    %v698 = vsel %vm94, %v680, 0
    %700 = vmatprep.subr.mxu0 0.0
    %701 = vmatpush1.msra.mxu0 %v681
    %702 = vmatprep.subr.mxu0 0.0
    %703 = vmatpush1.msra.mxu0 %v682
    %704 = vmatprep.subr.mxu0 0.0
    %705 = vmatpush1.msra.mxu0 %v683
    %706 = vmatprep.subr.mxu0 0.0
    %707 = vmatpush1.msra.mxu0 %v684
    %708 = vmatprep.subr.mxu0 0.0
    %709 = vmatpush1.msra.mxu0 %v685
    %710 = vmatprep.subr.mxu0 0.0
    %711 = vmatpush1.msra.mxu0 %v686
    %712 = vmatprep.subr.mxu0 0.0
    %713 = vmatpush1.msra.mxu0 0.0
    %714 = vmatprep.subr.mxu0 0.0
    %715 = vmatpush1.msra.mxu0 0.0
    %716 = vmatprep.subr.mxu0 0.0
    %717 = vmatpush1.msra.mxu0 0.0
    %718 = vmatprep.subr.mxu0 0.0
    %719 = vmatpush1.msra.mxu0 0.0
    %720 = vmatprep.subr.mxu0 0.0
    %721 = vmatpush1.msra.mxu0 0.0
    %722 = vmatprep.subr.mxu0 0.0
    %723 = vmatpush1.msra.mxu0 0.0
    %724 = vmatprep.subr.mxu0 0.0
    %725 = vmatpush1.msra.mxu0 0.0
    %726 = vmatprep.subr.mxu0 0.0
    %727 = vmatpush1.msra.mxu0 0.0
    %728 = vmatprep.subr.mxu0 0.0
    %729 = vmatpush1.msra.mxu0 0.0
    %730 = vmatprep.subr.mxu0 0.0
    %731 = vmatpush1.msra.mxu0 0.0
    %732 = vmatprep.subr.mxu0 0.0
    %733 = vmatpush1.msra.mxu0 0.0
    %734 = vmatprep.subr.mxu0 0.0
    %735 = vmatpush1.msra.mxu0 0.0
    %736 = vmatprep.subr.mxu0 0.0
    %737 = vmatpush1.msra.mxu0 0.0
    %738 = vmatprep.subr.mxu0 0.0
    %739 = vmatpush1.msra.mxu0 0.0
    %740 = vmatprep.subr.mxu0 0.0
    %741 = vmatpush1.msra.mxu0 0.0
    %742 = vmatprep.subr.mxu0 0.0
    %743 = vmatpush1.msra.mxu0 0.0
    %744 = vmatprep.subr.mxu0 0.0
    %745 = vmatpush1.msra.mxu0 0.0
    %746 = vmatprep.subr.mxu0 0.0
    %747 = vmatpush1.msra.mxu0 0.0
    %748 = vmatprep.subr.mxu0 0.0
    %749 = vmatpush1.msra.mxu0 0.0
    %750 = vmatprep.subr.mxu0 0.0
    %751 = vmatpush1.msra.mxu0 0.0
    %752 = vmatprep.subr.mxu0 0.0
    %753 = vmatpush1.msra.mxu0 0.0
    %754 = vmatprep.subr.mxu0 0.0
    %755 = vmatpush1.msra.mxu0 0.0
    %756 = vmatprep.subr.mxu0 0.0
    %757 = vmatpush1.msra.mxu0 0.0
    %758 = vmatprep.subr.mxu0 0.0
    %759 = vmatpush1.msra.mxu0 0.0
    %760 = vmatprep.subr.mxu0 0.0
    %761 = vmatpush1.msra.mxu0 0.0
    %762 = vmatprep.subr.mxu0 0.0
    %763 = vmatpush1.msra.mxu0 0.0
    %764 = vmatprep.mubr.f32.mxu0 0.0
    %765 = vmatmul.mubr.f32.gmra.mrb[0].mxu0 %v695
    %v766 = vpop.f32.mrb[0].mxu0
    %v767 = vadd.f32 %v692, %v766
    %v768 = vpop.f32.mrb[0].mxu0
    %769 = vmatprep.mubr.f32.mxu0 0.0
    %770 = vmatmul.mubr.f32.gmra.mrb[0].mxu0 %v698
    %v771 = vpop.f32.mrb[0].mxu0
    %v772 = vadd.f32 %v692, %v771
    %v773 = vpop.f32.mrb[0].mxu0
    %774 = vdwg.mxu0
    %v775 = vmax.f32 %v767, 0.0
    %v776 = vmax.f32 %v772, 0.0
    %777 = vst.msk [vmem:[#allocation2] sm:$0xff] %vm46, 0.0
    %778 = vst.msk [vmem:[#allocation2 + $0x8] sm:$0xff] %vm46, 0.0
    %779 = vst.msk [vmem:[#allocation2 + $0x10] sm:$0x3] %vm49, 0.0
    %780 = vst.msk [vmem:[#allocation2 + $0x1] sm:$0xff] %vm78, %v775
    %781 = vst.msk [vmem:[#allocation2 + $0x9] sm:$0xff] %vm78, %v776
    %v782 = vld [vmem:[#allocation2] sm:$0xff]
    %v783 = vld [vmem:[#allocation2 + $0x8] sm:$0xff]
    %v784 = vld [vmem:[#allocation2 + $0x1] sm:$0xff]
    %v785 = vld [vmem:[#allocation2 + $0x9] sm:$0xff]
    %v786 = vld [vmem:[#allocation2 + $0x2] sm:$0xff]
    %v787 = vld [vmem:[#allocation2 + $0xa] sm:$0xff]
    %790 = vrot.lane.b32.xlu0 %v784, 32
    %v791 = vpop.permute.xlu0 %790
    %792 = vrot.lane.b32.xlu0 %v785, 32
    %v793 = vpop.permute.xlu0 %792
    %798 = vrot.lane.b32.xlu0 %v786, 64
    %v799 = vpop.permute.xlu0 %798
    %800 = vrot.lane.b32.xlu0 %v787, 64
    %v801 = vpop.permute.xlu0 %800
    %v804 = vsel %vm78, %v782, %v791
    %v805 = vsel %vm78, %v783, %v793
    %v806 = vsel %vm207, %v804, %v799
    %v807 = vsel %vm207, %v805, %v801
    %v808 = vld [vmem:[%s4] sm:$0xff]
    %v809 = vld [vmem:[%s4 + $0x8] sm:$0xff]
    %v810 = vld [vmem:[%s4 + $0x10] sm:$0xff]
    %v811 = vld [vmem:[%s4 + $0x18] sm:$0xff]
    %v812 = vld [vmem:[%s4 + $0x20] sm:$0xff]
    %v813 = vld [vmem:[%s4 + $0x28] sm:$0xff]
    %v814 = vld [vmem:[%s4 + $0x30] sm:$0xff]
    %v815 = vld [vmem:[%s4 + $0x38] sm:$0xff]
    %v816 = vld [vmem:[%s4 + $0x40] sm:$0xff]
    %v817 = vld [vmem:[%s4 + $0x48] sm:$0xff]
    %v818 = vld [vmem:[%s4 + $0x50] sm:$0xff]
    %v819 = vld [vmem:[%s4 + $0x58] sm:$0xff]
    %v820 = vld [vmem:[%s5] sm:$0x1]
    %v822 = vlaneseq
    %v823 = vshrl.u32 %v822, 7
    %v824 = vsub.s32 0, %v823
    %v825 = vrot.slane %v820, %v824
    %v828 = vsel %vm229, %v806, 0
    %v831 = vsel %vm229, %v807, 0
    %833 = vmatprep.subr.mxu0 0.0
    %834 = vmatpush1.msra.mxu0 %v808
    %835 = vmatprep.subr.mxu0 0.0
    %836 = vmatpush1.msra.mxu0 %v809
    %837 = vmatprep.subr.mxu0 0.0
    %838 = vmatpush1.msra.mxu0 %v810
    %839 = vmatprep.subr.mxu0 0.0
    %840 = vmatpush1.msra.mxu0 %v811
    %841 = vmatprep.subr.mxu0 0.0
    %842 = vmatpush1.msra.mxu0 %v812
    %843 = vmatprep.subr.mxu0 0.0
    %844 = vmatpush1.msra.mxu0 %v813
    %845 = vmatprep.subr.mxu0 0.0
    %846 = vmatpush1.msra.mxu0 %v814
    %847 = vmatprep.subr.mxu0 0.0
    %848 = vmatpush1.msra.mxu0 %v815
    %849 = vmatprep.subr.mxu0 0.0
    %850 = vmatpush1.msra.mxu0 %v816
    %851 = vmatprep.subr.mxu0 0.0
    %852 = vmatpush1.msra.mxu0 %v817
    %853 = vmatprep.subr.mxu0 0.0
    %854 = vmatpush1.msra.mxu0 %v818
    %855 = vmatprep.subr.mxu0 0.0
    %856 = vmatpush1.msra.mxu0 %v819
    %857 = vmatprep.subr.mxu0 0.0
    %858 = vmatpush1.msra.mxu0 0.0
    %859 = vmatprep.subr.mxu0 0.0
    %860 = vmatpush1.msra.mxu0 0.0
    %861 = vmatprep.subr.mxu0 0.0
    %862 = vmatpush1.msra.mxu0 0.0
    %863 = vmatprep.subr.mxu0 0.0
    %864 = vmatpush1.msra.mxu0 0.0
    %865 = vmatprep.subr.mxu0 0.0
    %866 = vmatpush1.msra.mxu0 0.0
    %867 = vmatprep.subr.mxu0 0.0
    %868 = vmatpush1.msra.mxu0 0.0
    %869 = vmatprep.subr.mxu0 0.0
    %870 = vmatpush1.msra.mxu0 0.0
    %871 = vmatprep.subr.mxu0 0.0
    %872 = vmatpush1.msra.mxu0 0.0
    %873 = vmatprep.subr.mxu0 0.0
    %874 = vmatpush1.msra.mxu0 0.0
    %875 = vmatprep.subr.mxu0 0.0
    %876 = vmatpush1.msra.mxu0 0.0
    %877 = vmatprep.subr.mxu0 0.0
    %878 = vmatpush1.msra.mxu0 0.0
    %879 = vmatprep.subr.mxu0 0.0
    %880 = vmatpush1.msra.mxu0 0.0
    %881 = vmatprep.subr.mxu0 0.0
    %882 = vmatpush1.msra.mxu0 0.0
    %883 = vmatprep.subr.mxu0 0.0
    %884 = vmatpush1.msra.mxu0 0.0
    %885 = vmatprep.subr.mxu0 0.0
    %886 = vmatpush1.msra.mxu0 0.0
    %887 = vmatprep.subr.mxu0 0.0
    %888 = vmatpush1.msra.mxu0 0.0
    %889 = vmatprep.subr.mxu0 0.0
    %890 = vmatpush1.msra.mxu0 0.0
    %891 = vmatprep.subr.mxu0 0.0
    %892 = vmatpush1.msra.mxu0 0.0
    %893 = vmatprep.subr.mxu0 0.0
    %894 = vmatpush1.msra.mxu0 0.0
    %895 = vmatprep.subr.mxu0 0.0
    %896 = vmatpush1.msra.mxu0 0.0
    %897 = vmatprep.mubr.f32.mxu0 0.0
    %898 = vmatmul.mubr.f32.gmra.mrb[0].mxu0 %v828
    %v899 = vpop.f32.mrb[0].mxu0
    %v900 = vadd.f32 %v825, %v899
    %v901 = vpop.f32.mrb[0].mxu0
    %902 = vmatprep.mubr.f32.mxu0 0.0
    %903 = vmatmul.mubr.f32.gmra.mrb[0].mxu0 %v831
    %v904 = vpop.f32.mrb[0].mxu0
    %v905 = vadd.f32 %v825, %v904
    %v906 = vpop.f32.mrb[0].mxu0
    %907 = vdwg.mxu0
    %v908 = vmax.f32 %v900, 0.0
    %v909 = vmax.f32 %v905, 0.0
    %910 = vst.msk [vmem:[#allocation2] sm:$0xff] %vm46, 0.0
    %911 = vst.msk [vmem:[#allocation2 + $0x8] sm:$0xff] %vm46, 0.0
    %912 = vst.msk [vmem:[#allocation2 + $0x10] sm:$0x3] %vm49, 0.0
    %913 = vst.msk [vmem:[#allocation2 + $0x1] sm:$0xff] %vm78, %v908
    %914 = vst.msk [vmem:[#allocation2 + $0x9] sm:$0xff] %vm78, %v909
    %s915 = scalar_lea.vmem %s1, 16
    %v916 = vld [vmem:[%s915] sm:$0xff]
    %v917 = vld [vmem:[%s915 + $0x8] sm:$0xff]
    %920 = vrot.lane.b32.xlu0 %v916, 32
    %v921 = vpop.permute.xlu0 %920
    %922 = vrot.lane.b32.xlu0 %v917, 32
    %v923 = vpop.permute.xlu0 %922
    %926 = vst.msk [vmem:[#allocation2 + $0x1] sm:$0xff] %vm328, %v921
    %927 = vst.msk [vmem:[#allocation2 + $0x9] sm:$0xff] %vm328, %v923
    %v928 = vld [vmem:[#allocation2] sm:$0xff]
    %v929 = vld [vmem:[#allocation2 + $0x8] sm:$0xff]
    %v930 = vld [vmem:[#allocation2 + $0x1] sm:$0xff]
    %v931 = vld [vmem:[#allocation2 + $0x9] sm:$0xff]
    %v932 = vld [vmem:[#allocation2 + $0x2] sm:$0xff]
    %v933 = vld [vmem:[#allocation2 + $0xa] sm:$0xff]
    %936 = vrot.lane.b32.xlu0 %v930, 33
    %v937 = vpop.permute.xlu0 %936
    %938 = vrot.lane.b32.xlu0 %v931, 33
    %v939 = vpop.permute.xlu0 %938
    %944 = vrot.lane.b32.xlu0 %v932, 66
    %v945 = vpop.permute.xlu0 %944
    %946 = vrot.lane.b32.xlu0 %v933, 66
    %v947 = vpop.permute.xlu0 %946
    %v950 = vsel %vm46, %v928, %v937
    %v951 = vsel %vm46, %v929, %v939
    %v952 = vsel %vm355, %v950, %v945
    %v953 = vsel %vm355, %v951, %v947
    %v954 = vld [vmem:[%s6] sm:$0xff]
    %v955 = vld [vmem:[%s6 + $0x8] sm:$0xff]
    %v956 = vld [vmem:[%s6 + $0x10] sm:$0xff]
    %v957 = vld [vmem:[%s6 + $0x18] sm:$0xff]
    %v958 = vld [vmem:[%s6 + $0x20] sm:$0xff]
    %v959 = vld [vmem:[%s6 + $0x28] sm:$0xff]
    %v960 = vld [vmem:[%s6 + $0x30] sm:$0xff]
    %v961 = vld [vmem:[%s6 + $0x38] sm:$0xff]
    %v962 = vld [vmem:[%s6 + $0x40] sm:$0xff]
    %v963 = vld [vmem:[%s6 + $0x48] sm:$0xff]
    %v964 = vld [vmem:[%s6 + $0x50] sm:$0xff]
    %v965 = vld [vmem:[%s6 + $0x58] sm:$0xff]
    %v966 = vld [vmem:[%s6 + $0x60] sm:$0x7]
    %v967 = vld [vmem:[%s7] sm:$0x1]
    %v969 = vlaneseq
    %v970 = vshrl.u32 %v969, 7
    %v971 = vsub.s32 0, %v970
    %v972 = vrot.slane %v967, %v971
    %v975 = vsel %vm378, %v952, 0
    %v978 = vsel %vm378, %v953, 0
    %v981 = vsel %vm385, %v966, 0
    %983 = vmatprep.subr.mxu0 0.0
    %984 = vmatpush1.msra.mxu0 %v954
    %985 = vmatprep.subr.mxu0 0.0
    %986 = vmatpush1.msra.mxu0 %v955
    %987 = vmatprep.subr.mxu0 0.0
    %988 = vmatpush1.msra.mxu0 %v956
    %989 = vmatprep.subr.mxu0 0.0
    %990 = vmatpush1.msra.mxu0 %v957
    %991 = vmatprep.subr.mxu0 0.0
    %992 = vmatpush1.msra.mxu0 %v958
    %993 = vmatprep.subr.mxu0 0.0
    %994 = vmatpush1.msra.mxu0 %v959
    %995 = vmatprep.subr.mxu0 0.0
    %996 = vmatpush1.msra.mxu0 %v960
    %997 = vmatprep.subr.mxu0 0.0
    %998 = vmatpush1.msra.mxu0 %v961
    %999 = vmatprep.subr.mxu0 0.0
    %1000 = vmatpush1.msra.mxu0 %v962
    %1001 = vmatprep.subr.mxu0 0.0
    %1002 = vmatpush1.msra.mxu0 %v963
    %1003 = vmatprep.subr.mxu0 0.0
    %1004 = vmatpush1.msra.mxu0 %v964
    %1005 = vmatprep.subr.mxu0 0.0
    %1006 = vmatpush1.msra.mxu0 %v965
    %1007 = vmatprep.subr.mxu0 0.0
    %1008 = vmatpush1.msra.mxu0 %v981
    %1009 = vmatprep.subr.mxu0 0.0
    %1010 = vmatpush1.msra.mxu0 0.0
    %1011 = vmatprep.subr.mxu0 0.0
    %1012 = vmatpush1.msra.mxu0 0.0
    %1013 = vmatprep.subr.mxu0 0.0
    %1014 = vmatpush1.msra.mxu0 0.0
    %1015 = vmatprep.subr.mxu0 0.0
    %1016 = vmatpush1.msra.mxu0 0.0
    %1017 = vmatprep.subr.mxu0 0.0
    %1018 = vmatpush1.msra.mxu0 0.0
    %1019 = vmatprep.subr.mxu0 0.0
    %1020 = vmatpush1.msra.mxu0 0.0
    %1021 = vmatprep.subr.mxu0 0.0
    %1022 = vmatpush1.msra.mxu0 0.0
    %1023 = vmatprep.subr.mxu0 0.0
    %1024 = vmatpush1.msra.mxu0 0.0
    %1025 = vmatprep.subr.mxu0 0.0
    %1026 = vmatpush1.msra.mxu0 0.0
    %1027 = vmatprep.subr.mxu0 0.0
    %1028 = vmatpush1.msra.mxu0 0.0
    %1029 = vmatprep.subr.mxu0 0.0
    %1030 = vmatpush1.msra.mxu0 0.0
    %1031 = vmatprep.subr.mxu0 0.0
    %1032 = vmatpush1.msra.mxu0 0.0
    %1033 = vmatprep.subr.mxu0 0.0
    %1034 = vmatpush1.msra.mxu0 0.0
    %1035 = vmatprep.subr.mxu0 0.0
    %1036 = vmatpush1.msra.mxu0 0.0
    %1037 = vmatprep.subr.mxu0 0.0
    %1038 = vmatpush1.msra.mxu0 0.0
    %1039 = vmatprep.subr.mxu0 0.0
    %1040 = vmatpush1.msra.mxu0 0.0
    %1041 = vmatprep.subr.mxu0 0.0
    %1042 = vmatpush1.msra.mxu0 0.0
    %1043 = vmatprep.subr.mxu0 0.0
    %1044 = vmatpush1.msra.mxu0 0.0
    %1045 = vmatprep.subr.mxu0 0.0
    %1046 = vmatpush1.msra.mxu0 0.0
    %1047 = vmatprep.mubr.f32.mxu0 0.0
    %1048 = vmatmul.mubr.f32.gmra.mrb[0].mxu0 %v975
    %v1049 = vpop.f32.mrb[0].mxu0
    %v1050 = vadd.f32 %v972, %v1049
    %v1051 = vpop.f32.mrb[0].mxu0
    %1052 = vmatprep.mubr.f32.mxu0 0.0
    %1053 = vmatmul.mubr.f32.gmra.mrb[0].mxu0 %v978
    %v1054 = vpop.f32.mrb[0].mxu0
    %v1055 = vadd.f32 %v972, %v1054
    %v1056 = vpop.f32.mrb[0].mxu0
    %1057 = vdwg.mxu0
    %v1058 = vmax.f32 %v1050, 0.0
    %v1059 = vmax.f32 %v1055, 0.0
    %1060 = vst.msk [vmem:[#allocation2] sm:$0xff] %vm46, 0.0
    %1061 = vst.msk [vmem:[#allocation2 + $0x8] sm:$0xff] %vm46, 0.0
    %1062 = vst.msk [vmem:[#allocation2 + $0x10] sm:$0x3] %vm49, 0.0
    %1063 = vst.msk [vmem:[#allocation2 + $0x1] sm:$0xff] %vm78, %v1058
    %1064 = vst.msk [vmem:[#allocation2 + $0x9] sm:$0xff] %vm78, %v1059
    %v1065 = vld [vmem:[#allocation2] sm:$0xff]
    %v1066 = vld [vmem:[#allocation2 + $0x8] sm:$0xff]
    %v1067 = vld [vmem:[#allocation2 + $0x1] sm:$0xff]
    %v1068 = vld [vmem:[#allocation2 + $0x9] sm:$0xff]
    %v1069 = vld [vmem:[#allocation2 + $0x2] sm:$0xff]
    %v1070 = vld [vmem:[#allocation2 + $0xa] sm:$0xff]
    %1073 = vrot.lane.b32.xlu0 %v1067, 32
    %v1074 = vpop.permute.xlu0 %1073
    %1075 = vrot.lane.b32.xlu0 %v1068, 32
    %v1076 = vpop.permute.xlu0 %1075
    %1081 = vrot.lane.b32.xlu0 %v1069, 64
    %v1082 = vpop.permute.xlu0 %1081
    %1083 = vrot.lane.b32.xlu0 %v1070, 64
    %v1084 = vpop.permute.xlu0 %1083
    %v1087 = vsel %vm78, %v1065, %v1074
    %v1088 = vsel %vm78, %v1066, %v1076
    %v1089 = vsel %vm207, %v1087, %v1082
    %v1090 = vsel %vm207, %v1088, %v1084
    %v1091 = vld [vmem:[%s8] sm:$0xff]
    %v1092 = vld [vmem:[%s8 + $0x8] sm:$0xff]
    %v1093 = vld [vmem:[%s8 + $0x10] sm:$0xff]
    %v1094 = vld [vmem:[%s8 + $0x18] sm:$0xff]
    %v1095 = vld [vmem:[%s8 + $0x20] sm:$0xff]
    %v1096 = vld [vmem:[%s8 + $0x28] sm:$0xff]
    %v1097 = vld [vmem:[%s8 + $0x30] sm:$0xff]
    %v1098 = vld [vmem:[%s8 + $0x38] sm:$0xff]
    %v1099 = vld [vmem:[%s8 + $0x40] sm:$0xff]
    %v1100 = vld [vmem:[%s8 + $0x48] sm:$0xff]
    %v1101 = vld [vmem:[%s8 + $0x50] sm:$0xff]
    %v1102 = vld [vmem:[%s8 + $0x58] sm:$0xff]
    %v1103 = vld [vmem:[%s9] sm:$0x1]
    %v1105 = vlaneseq
    %v1106 = vshrl.u32 %v1105, 7
    %v1107 = vsub.s32 0, %v1106
    %v1108 = vrot.slane %v1103, %v1107
    %v1111 = vsel %vm229, %v1089, 0
    %v1114 = vsel %vm229, %v1090, 0
    %1116 = vmatprep.subr.mxu0 0.0
    %1117 = vmatpush1.msra.mxu0 %v1091
    %1118 = vmatprep.subr.mxu0 0.0
    %1119 = vmatpush1.msra.mxu0 %v1092
    %1120 = vmatprep.subr.mxu0 0.0
    %1121 = vmatpush1.msra.mxu0 %v1093
    %1122 = vmatprep.subr.mxu0 0.0
    %1123 = vmatpush1.msra.mxu0 %v1094
    %1124 = vmatprep.subr.mxu0 0.0
    %1125 = vmatpush1.msra.mxu0 %v1095
    %1126 = vmatprep.subr.mxu0 0.0
    %1127 = vmatpush1.msra.mxu0 %v1096
    %1128 = vmatprep.subr.mxu0 0.0
    %1129 = vmatpush1.msra.mxu0 %v1097
    %1130 = vmatprep.subr.mxu0 0.0
    %1131 = vmatpush1.msra.mxu0 %v1098
    %1132 = vmatprep.subr.mxu0 0.0
    %1133 = vmatpush1.msra.mxu0 %v1099
    %1134 = vmatprep.subr.mxu0 0.0
    %1135 = vmatpush1.msra.mxu0 %v1100
    %1136 = vmatprep.subr.mxu0 0.0
    %1137 = vmatpush1.msra.mxu0 %v1101
    %1138 = vmatprep.subr.mxu0 0.0
    %1139 = vmatpush1.msra.mxu0 %v1102
    %1140 = vmatprep.subr.mxu0 0.0
    %1141 = vmatpush1.msra.mxu0 0.0
    %1142 = vmatprep.subr.mxu0 0.0
    %1143 = vmatpush1.msra.mxu0 0.0
    %1144 = vmatprep.subr.mxu0 0.0
    %1145 = vmatpush1.msra.mxu0 0.0
    %1146 = vmatprep.subr.mxu0 0.0
    %1147 = vmatpush1.msra.mxu0 0.0
    %1148 = vmatprep.subr.mxu0 0.0
    %1149 = vmatpush1.msra.mxu0 0.0
    %1150 = vmatprep.subr.mxu0 0.0
    %1151 = vmatpush1.msra.mxu0 0.0
    %1152 = vmatprep.subr.mxu0 0.0
    %1153 = vmatpush1.msra.mxu0 0.0
    %1154 = vmatprep.subr.mxu0 0.0
    %1155 = vmatpush1.msra.mxu0 0.0
    %1156 = vmatprep.subr.mxu0 0.0
    %1157 = vmatpush1.msra.mxu0 0.0
    %1158 = vmatprep.subr.mxu0 0.0
    %1159 = vmatpush1.msra.mxu0 0.0
    %1160 = vmatprep.subr.mxu0 0.0
    %1161 = vmatpush1.msra.mxu0 0.0
    %1162 = vmatprep.subr.mxu0 0.0
    %1163 = vmatpush1.msra.mxu0 0.0
    %1164 = vmatprep.subr.mxu0 0.0
    %1165 = vmatpush1.msra.mxu0 0.0
    %1166 = vmatprep.subr.mxu0 0.0
    %1167 = vmatpush1.msra.mxu0 0.0
    %1168 = vmatprep.subr.mxu0 0.0
    %1169 = vmatpush1.msra.mxu0 0.0
    %1170 = vmatprep.subr.mxu0 0.0
    %1171 = vmatpush1.msra.mxu0 0.0
    %1172 = vmatprep.subr.mxu0 0.0
    %1173 = vmatpush1.msra.mxu0 0.0
    %1174 = vmatprep.subr.mxu0 0.0
    %1175 = vmatpush1.msra.mxu0 0.0
    %1176 = vmatprep.subr.mxu0 0.0
    %1177 = vmatpush1.msra.mxu0 0.0
    %1178 = vmatprep.subr.mxu0 0.0
    %1179 = vmatpush1.msra.mxu0 0.0
    %1180 = vmatprep.mubr.f32.mxu0 0.0
    %1181 = vmatmul.mubr.f32.gmra.mrb[0].mxu0 %v1111
    %v1182 = vpop.f32.mrb[0].mxu0
    %v1183 = vadd.f32 %v1108, %v1182
    %v1184 = vpop.f32.mrb[0].mxu0
    %1185 = vmatprep.mubr.f32.mxu0 0.0
    %1186 = vmatmul.mubr.f32.gmra.mrb[0].mxu0 %v1114
    %v1187 = vpop.f32.mrb[0].mxu0
    %v1188 = vadd.f32 %v1108, %v1187
    %v1189 = vpop.f32.mrb[0].mxu0
    %1190 = vdwg.mxu0
    %v1191 = vmax.f32 %v1183, 0.0
    %v1192 = vmax.f32 %v1188, 0.0
    %v1193 = vld [vmem:[%s10] sm:$0x1]
    %v1195 = vlaneseq
    %v1196 = vshrl.u32 %v1195, 7
    %v1197 = vsub.s32 0, %v1196
    %v1198 = vrot.slane %v1193, %v1197
    %v1200 = vmul.f32 %v1191, %v1198
    %v1201 = vmul.f32 %v1192, %v1198
    %v1202 = vsel %vm78, %v1200, 0.0
    %1203 = vadd.xlane.f32.xlu0 %v1202
    %v1204 = vpop.xlane.xlu0 %1203
    %v1205 = vsel %vm78, %v1201, 0.0
    %1206 = vadd.xlane.f32.xlu0 %v1205
    %v1207 = vpop.xlane.xlu0 %1206
    %v1208 = vld [vmem:[#allocation3] sm:$0x1]
    %v1210 = vlaneseq
    %v1211 = vshrl.u32 %v1210, 7
    %v1212 = vsub.s32 0, %v1211
    %v1213 = vrot.slane %v1208, %v1212
    %v1215 = vadd.f32 %v1204, %v1213
    %v1216 = vadd.f32 %v1207, %v1213
    %1219 = vset.pattern.permute.xlu0 0
    %1220 = vperm.xlu0 %1219, %v1215
    %v1221 = vpop.permute.xlu0 %1220
    %1222 = vset.pattern.permute.xlu0 0
    %1223 = vperm.xlu0 %1222, %v1216
    %v1224 = vpop.permute.xlu0 %1223
    %v1225 = vlaneseq
    %v1226 = vshrl.u32 %v1225, 7
    %v1227 = vsub.s32 %v632, %v1226
    %v1228 = vrot.slane %v1221, %v1227
    %v1229 = vlaneseq
    %v1230 = vshrl.u32 %v1229, 7
    %v1231 = vsub.s32 %v637, %v1230
    %v1232 = vrot.slane %v1224, %v1231
    %v1233 = vsel %vm642, %v1232, %v1228
    %1235 = vst.msk [vmem:[#allocation4 + $0x1] sm:$0x1] %vm645, %v1233
    // Predicated region
    $region50: #{tpu_custom_call.1} parent=1 // pred_check
      _
    $region51: #{tpu_custom_call.1} parent=1 // pred_check_branch
      %1237 = sbr.rel (0) target = $region53
    $region52: #{tpu_custom_call.1} parent=1 // pred_region
      %s1239 = ssub.s32 32, 32
      %1240 = vsyncadd [#allocation5], %s1239
      %s1242 = sshll.u32 [#allocation4], 4
      %s1243 = int_to_ptr.vmem [resolvable:$true] %s1242
      %1245 = dma.vmem_to_hbm [thread:$0]  %s1243, 32, %s12, [#allocation5]
    $region53: #{tpu_custom_call.1} parent=1 // pred_fallthru
      _
    // Predicated region
    $region54: #{tpu_custom_call.1} parent=1 // pred_check
      _
    $region55: #{tpu_custom_call.1} parent=1 // pred_check_branch
      %1247 = sbr.rel (0) target = $region57
    $region56: #{tpu_custom_call.1} parent=1 // pred_region
      %1248 = dma.done [#allocation5], 32
    $region57: #{tpu_custom_call.1} parent=1 // pred_fallthru
      _
    %1249 = vsyncpa [#allocation5], 1

</llo_original>
